<compile_context>
chip_gen: v5e
topology: v5e:2x2
jax: 0.10.0
libtpu: 0.0.40
codegen_flags: <defaults>
</compile_context>

<pallas_src>
import math
import numpy as np
import jax
import jax.numpy as jnp
from jax import lax
from jax.experimental import pallas as pl
from jax.experimental.pallas import tpu as pltpu


def _lstm_kernel(lens_ref, xg_ref, whh0_ref, w1_ref, b1_ref,
                 hs_ref, hn_ref, cn_ref):
    """One grid step == one batch tile; the full time loop runs in-kernel."""
    T = xg_ref.shape[0]
    BT = hs_ref.shape[0]
    H = hs_ref.shape[2]

    lens = lens_ref[...]                                   # (BT, 1) int32
    whh0 = whh0_ref[...]                                   # (H, 4H)
    w1 = w1_ref[...]                                       # (2H, 4H)  [wih1; whh1]
    b1 = jnp.broadcast_to(b1_ref[...], (BT, 4 * H))        # hoisted broadcast

    def gates_split(g):
        return (jax.nn.sigmoid(g[:, 0:H]),
                jax.nn.sigmoid(g[:, H:2 * H]),
                jnp.tanh(g[:, 2 * H:3 * H]),
                jax.nn.sigmoid(g[:, 3 * H:4 * H]))

    def step(t, carry):
        h0, c0, h1, c1 = carry
        mask = t < lens                                    # (BT, 1) valid positions

        # layer 0: input projection (and b0) precomputed outside the kernel.
        g0 = xg_ref[t] + jnp.dot(h0, whh0, preferred_element_type=jnp.float32)
        i0, f0, gg0, o0 = gates_split(g0)
        c0n = f0 * c0 + i0 * gg0
        h0n = o0 * jnp.tanh(c0n)
        h0 = jnp.where(mask, h0n, h0)
        c0 = jnp.where(mask, c0n, c0)

        # layer 1: fused [input ; hidden] matmul (single K=2H dot).
        g1 = jnp.dot(jnp.concatenate([h0, h1], axis=-1), w1,
                     preferred_element_type=jnp.float32) + b1
        i1, f1, gg1, o1 = gates_split(g1)
        c1n = f1 * c1 + i1 * gg1
        h1n = o1 * jnp.tanh(c1n)
        h1 = jnp.where(mask, h1n, h1)
        c1 = jnp.where(mask, c1n, c1)

        # pad_packed_sequence pads outputs with zeros before the Linear.
        hs_ref[:, pl.ds(t, 1), :] = jnp.where(mask, h1, 0.0)[:, None, :]
        return (h0, c0, h1, c1)

    zeros = jnp.zeros((BT, H), jnp.float32)
    h0, c0, h1, c1 = lax.fori_loop(0, T, step, (zeros, zeros, zeros, zeros),
                                   unroll=True)

    # final hidden / cell states written once, after the recurrence.
    hn_ref[0] = h0
    hn_ref[1] = h1
    cn_ref[0] = c0
    cn_ref[1] = c1


def rnn_classification_forward(input_sequences, input_sequences_lengths, params,
                               batch_tile=8):
    """Pallas equivalent of RNN_classification.forward (hidden=None)."""
    emb = params["embedding"]                                          # (V, H)
    x = jnp.take(emb, input_sequences, axis=0).astype(jnp.float32)     # (T, B, H)
    T, B, H = x.shape
    C = params["wfc"].shape[1]

    # Hoisted layer-0 input projection: one MXU-friendly (T*B,H)x(H,4H) matmul.
    xg = (x.reshape(T * B, H) @ params["wih0"] + params["b0"]).reshape(T, B, 4 * H)

    # Pad batch to a multiple of the sublane count / batch tile.
    Bp = max(batch_tile, int(math.ceil(B / batch_tile)) * batch_tile)
    pad = Bp - B
    lens = input_sequences_lengths.astype(jnp.int32)
    if pad:
        xg = jnp.pad(xg, ((0, 0), (0, pad), (0, 0)))
        lens = jnp.pad(lens, (0, pad))                    # padded rows: length 0
    lens2d = lens.reshape(Bp, 1)

    # Stacked layer-1 weights for the fused [h0 ; h1] gate matmul.
    w1 = jnp.concatenate([params["wih1"], params["whh1"]], axis=0)     # (2H, 4H)

    nb = Bp // batch_tile
    hs, h_n, c_n = pl.pallas_call(
        _lstm_kernel,
        out_shape=(
            jax.ShapeDtypeStruct((Bp, T, H), jnp.float32),   # masked hidden states
            jax.ShapeDtypeStruct((2, Bp, H), jnp.float32),   # h_n
            jax.ShapeDtypeStruct((2, Bp, H), jnp.float32),   # c_n
        ),
        grid_spec=pltpu.PrefetchScalarGridSpec(
            num_scalar_prefetch=0,
            grid=(nb,),
            in_specs=[
                pl.BlockSpec((batch_tile, 1), lambda b: (b, 0)),          # lengths
                pl.BlockSpec((T, batch_tile, 4 * H), lambda b: (0, b, 0)),  # xg
                pl.BlockSpec((H, 4 * H), lambda b: (0, 0)),               # whh0
                pl.BlockSpec((2 * H, 4 * H), lambda b: (0, 0)),           # [wih1;whh1]
                pl.BlockSpec((1, 4 * H), lambda b: (0, 0)),               # b1
            ],
            out_specs=[
                pl.BlockSpec((batch_tile, T, H), lambda b: (b, 0, 0)),
                pl.BlockSpec((2, batch_tile, H), lambda b: (0, b, 0)),
                pl.BlockSpec((2, batch_tile, H), lambda b: (0, b, 0)),
            ],
        ),
        compiler_params=pltpu.CompilerParams(
            dimension_semantics=("parallel",),
            vmem_limit_bytes=32 * 1024 * 1024),
    )(lens2d, xg, params["whh0"], w1, params["b1"])

    # Final Linear batched over all timesteps: one (B*T,H)x(H,C) matmul.
    hs = hs[:B]                                            # drop batch padding
    logits_flatten = hs.reshape(B * T, H) @ params["wfc"] + params["bfc"]
    h_n = h_n[:, :B]
    c_n = c_n[:, :B]
    return logits_flatten, (h_n, c_n)


def _ref_forward(input_sequences, lengths, params):
    """Pure-JAX reference (same masked-LSTM math) for correctness check."""
    x = jnp.take(params["embedding"], input_sequences, axis=0).astype(jnp.float32)
    T, B, H = x.shape
    C = params["wfc"].shape[1]

    def cell(inp, h, c, wih, whh, b):
        g = inp @ wih + h @ whh + b
        i = jax.nn.sigmoid(g[:, :H]); f = jax.nn.sigmoid(g[:, H:2 * H])
        gg = jnp.tanh(g[:, 2 * H:3 * H]); o = jax.nn.sigmoid(g[:, 3 * H:])
        c_new = f * c + i * gg
        return o * jnp.tanh(c_new), c_new

    def step(carry, xt_t):
        xt, t = xt_t
        h0, c0, h1, c1 = carry
        m = (t < lengths)[:, None]
        h0n, c0n = cell(xt, h0, c0, params["wih0"], params["whh0"], params["b0"])
        h0 = jnp.where(m, h0n, h0); c0 = jnp.where(m, c0n, c0)
        h1n, c1n = cell(h0, h1, c1, params["wih1"], params["whh1"], params["b1"])
        h1 = jnp.where(m, h1n, h1); c1 = jnp.where(m, c1n, c1)
        out = jnp.where(m, h1, 0.0)
        return (h0, c0, h1, c1), out @ params["wfc"] + params["bfc"]

    zeros = jnp.zeros((B, H), jnp.float32)
    (h0, c0, h1, c1), outs = jax.lax.scan(step, (zeros, zeros, zeros, zeros),
                                          (x, jnp.arange(T)))
    logits_flat = jnp.transpose(outs, (1, 0, 2)).reshape(-1, C)
    return logits_flat, (jnp.stack([h0, h1]), jnp.stack([c0, c1]))


def init_params(key, vocab_size, hidden_size, num_classes):
    H, C = hidden_size, num_classes
    ks = jax.random.split(key, 12)
    s = 1.0 / math.sqrt(H)
    u = lambda k, shape: jax.random.uniform(k, shape, jnp.float32, -s, s)
    return {
        "embedding": jax.random.normal(ks[0], (vocab_size, H), jnp.float32),
        # LSTM weights stored pre-transposed: (in, 4H); biases combined b_ih + b_hh.
        "wih0": u(ks[1], (H, 4 * H)), "whh0": u(ks[2], (H, 4 * H)),
        "b0": u(ks[3], (1, 4 * H)) + u(ks[4], (1, 4 * H)),
        "wih1": u(ks[5], (H, 4 * H)), "whh1": u(ks[6], (H, 4 * H)),
        "b1": u(ks[7], (1, 4 * H)) + u(ks[8], (1, 4 * H)),
        "wfc": u(ks[9], (H, C)), "bfc": u(ks[10], (1, C)),
    }


if __name__ == "__main__":
    vocab_size, hidden_size, num_classes = 16, 32, 8
    T, B = 8, 4

    key = jax.random.PRNGKey(0)
    k_tok, k_par = jax.random.split(key)
    params = init_params(k_par, vocab_size, hidden_size, num_classes)

    # pack_padded_sequence requires lengths sorted in decreasing order.
    lengths = jnp.array([8, 6, 5, 3], dtype=jnp.int32)
    input_sequences = jax.random.randint(k_tok, (T, B), 0, vocab_size, jnp.int32)

    logits_flat, (h_n, c_n) = rnn_classification_forward(input_sequences, lengths, params)
    jax.block_until_ready((logits_flat, h_n, c_n))

    ref_logits, (ref_h, ref_c) = _ref_forward(input_sequences, lengths, params)
    assert logits_flat.shape == (B * T, num_classes)
    assert h_n.shape == (2, B, hidden_size) and c_n.shape == (2, B, hidden_size)
    np.testing.assert_allclose(np.asarray(logits_flat), np.asarray(ref_logits),
                               rtol=1e-4, atol=1e-4)
    np.testing.assert_allclose(np.asarray(h_n), np.asarray(ref_h), rtol=1e-4, atol=1e-4)
    np.testing.assert_allclose(np.asarray(c_n), np.asarray(ref_c), rtol=1e-4, atol=1e-4)

    print("KERNEL_OK")
</pallas_src>

<mosaic_0001>
module attributes {stable_mosaic.version = 11 : i64} {
  func.func @_lstm_kernel(%arg0: i32, %arg1: memref<8x1xi32, #tpu.memory_space<vmem>>, %arg2: memref<8x8x128xf32, #tpu.memory_space<vmem>>, %arg3: memref<32x128xf32, #tpu.memory_space<vmem>>, %arg4: memref<64x128xf32, #tpu.memory_space<vmem>>, %arg5: memref<1x128xf32, #tpu.memory_space<vmem>>, %arg6: memref<8x8x32xf32, #tpu.memory_space<vmem>>, %arg7: memref<2x8x32xf32, #tpu.memory_space<vmem>>, %arg8: memref<2x8x32xf32, #tpu.memory_space<vmem>>) attributes {dimension_semantics = [#tpu.dimension_semantics<parallel>], iteration_bounds = array<i64: 1>, scalar_prefetch = 0 : i64, scratch_operands = 0 : i64, tpu.core_type = #tpu.core_type<tc>, window_params = [{transform_indices = @transform_0, window_bounds = array<i64: 8, 1>}, {transform_indices = @transform_1, window_bounds = array<i64: 8, 8, 128>}, {pipeline_mode = #tpu.pipeline_mode<synchronous>, transform_indices = @transform_2, window_bounds = array<i64: 32, 128>}, {pipeline_mode = #tpu.pipeline_mode<synchronous>, transform_indices = @transform_3, window_bounds = array<i64: 64, 128>}, {pipeline_mode = #tpu.pipeline_mode<synchronous>, transform_indices = @transform_4, window_bounds = array<i64: 1, 128>}, {transform_indices = @transform_5, window_bounds = array<i64: 8, 8, 32>}, {transform_indices = @transform_6, window_bounds = array<i64: 2, 8, 32>}, {transform_indices = @transform_7, window_bounds = array<i64: 2, 8, 32>}]} {
    %c0 = arith.constant 0 : index
    %c0_0 = arith.constant 0 : index
    %0 = vector.load %arg1[%c0, %c0_0] : memref<8x1xi32, #tpu.memory_space<vmem>>, vector<8x1xi32>
    %c0_1 = arith.constant 0 : index
    %c0_2 = arith.constant 0 : index
    %1 = vector.load %arg3[%c0_1, %c0_2] : memref<32x128xf32, #tpu.memory_space<vmem>>, vector<32x128xf32>
    %c0_3 = arith.constant 0 : index
    %c0_4 = arith.constant 0 : index
    %2 = vector.load %arg4[%c0_3, %c0_4] : memref<64x128xf32, #tpu.memory_space<vmem>>, vector<64x128xf32>
    %c0_5 = arith.constant 0 : index
    %c0_6 = arith.constant 0 : index
    %3 = vector.load %arg5[%c0_5, %c0_6] : memref<1x128xf32, #tpu.memory_space<vmem>>, vector<1x128xf32>
    %4 = vector.shape_cast %3 : vector<1x128xf32> to vector<1x128xf32>
    %5 = vector.broadcast %4 : vector<1x128xf32> to vector<8x128xf32>
    %cst = arith.constant 0.000000e+00 : f32
    %6 = vector.broadcast %cst : f32 to vector<8x32xf32>
    %c0_i32 = arith.constant 0 : i32
    %7 = vector.broadcast %c0_i32 : i32 to vector<8x1xi32>
    %8 = arith.cmpi slt, %7, %0 : vector<8x1xi32>
    %9 = arith.index_cast %c0_i32 : i32 to index
    %c0_7 = arith.constant 0 : index
    %c0_8 = arith.constant 0 : index
    %10 = vector.load %arg2[%9, %c0_7, %c0_8] : memref<8x8x128xf32, #tpu.memory_space<vmem>>, vector<1x8x128xf32>
    %11 = vector.shape_cast %10 : vector<1x8x128xf32> to vector<8x128xf32>
    %cst_9 = arith.constant dense<0.000000e+00> : vector<8x128xf32>
    %12 = tpu.matmul %6, %1, %cst_9 {dimension_numbers = #tpu.dot_dimension_numbers<[1], [0], [0], [1], [0, 0, 1, 1], [], []>} : vector<8x32xf32>, vector<32x128xf32>, vector<8x128xf32> -> vector<8x128xf32>
    %13 = arith.addf %11, %12 : vector<8x128xf32>
    %14 = vector.extract_strided_slice %13 {offsets = [0, 0], sizes = [8, 32], strides = [1, 1]} : vector<8x128xf32> to vector<8x32xf32>
    %15 = arith.negf %14 : vector<8x32xf32>
    %16 = math.exp %15 : vector<8x32xf32>
    %cst_10 = arith.constant 1.000000e+00 : f32
    %17 = vector.broadcast %cst_10 : f32 to vector<8x32xf32>
    %18 = arith.addf %17, %16 : vector<8x32xf32>
    %19 = arith.divf %17, %18 : vector<8x32xf32>
    %20 = vector.extract_strided_slice %13 {offsets = [0, 32], sizes = [8, 32], strides = [1, 1]} : vector<8x128xf32> to vector<8x32xf32>
    %21 = arith.negf %20 : vector<8x32xf32>
    %22 = math.exp %21 : vector<8x32xf32>
    %cst_11 = arith.constant 1.000000e+00 : f32
    %23 = vector.broadcast %cst_11 : f32 to vector<8x32xf32>
    %24 = arith.addf %23, %22 : vector<8x32xf32>
    %25 = arith.divf %23, %24 : vector<8x32xf32>
    %26 = vector.extract_strided_slice %13 {offsets = [0, 64], sizes = [8, 32], strides = [1, 1]} : vector<8x128xf32> to vector<8x32xf32>
    %27 = math.tanh %26 : vector<8x32xf32>
    %28 = vector.extract_strided_slice %13 {offsets = [0, 96], sizes = [8, 32], strides = [1, 1]} : vector<8x128xf32> to vector<8x32xf32>
    %29 = arith.negf %28 : vector<8x32xf32>
    %30 = math.exp %29 : vector<8x32xf32>
    %cst_12 = arith.constant 1.000000e+00 : f32
    %31 = vector.broadcast %cst_12 : f32 to vector<8x32xf32>
    %32 = arith.addf %31, %30 : vector<8x32xf32>
    %33 = arith.divf %31, %32 : vector<8x32xf32>
    %34 = arith.mulf %25, %6 : vector<8x32xf32>
    %35 = arith.mulf %19, %27 : vector<8x32xf32>
    %36 = arith.addf %34, %35 : vector<8x32xf32>
    %37 = math.tanh %36 : vector<8x32xf32>
    %38 = arith.mulf %33, %37 : vector<8x32xf32>
    %39 = vector.shape_cast %8 : vector<8x1xi1> to vector<8x1xi1>
    %40 = vector.broadcast %39 : vector<8x1xi1> to vector<8x32xi1>
    %41 = arith.select %40, %38, %6 : vector<8x32xi1>, vector<8x32xf32>
    %42 = vector.shape_cast %8 : vector<8x1xi1> to vector<8x1xi1>
    %43 = vector.broadcast %42 : vector<8x1xi1> to vector<8x32xi1>
    %44 = arith.select %43, %36, %6 : vector<8x32xi1>, vector<8x32xf32>
    %45 = tpu.concatenate %41, %6 in 1 : vector<8x32xf32>, vector<8x32xf32> -> vector<8x64xf32>
    %cst_13 = arith.constant dense<0.000000e+00> : vector<8x128xf32>
    %46 = tpu.matmul %45, %2, %cst_13 {dimension_numbers = #tpu.dot_dimension_numbers<[1], [0], [0], [1], [0, 0, 1, 1], [], []>} : vector<8x64xf32>, vector<64x128xf32>, vector<8x128xf32> -> vector<8x128xf32>
    %47 = arith.addf %46, %5 : vector<8x128xf32>
    %48 = vector.extract_strided_slice %47 {offsets = [0, 0], sizes = [8, 32], strides = [1, 1]} : vector<8x128xf32> to vector<8x32xf32>
    %49 = arith.negf %48 : vector<8x32xf32>
    %50 = math.exp %49 : vector<8x32xf32>
    %cst_14 = arith.constant 1.000000e+00 : f32
    %51 = vector.broadcast %cst_14 : f32 to vector<8x32xf32>
    %52 = arith.addf %51, %50 : vector<8x32xf32>
    %53 = arith.divf %51, %52 : vector<8x32xf32>
    %54 = vector.extract_strided_slice %47 {offsets = [0, 32], sizes = [8, 32], strides = [1, 1]} : vector<8x128xf32> to vector<8x32xf32>
    %55 = arith.negf %54 : vector<8x32xf32>
    %56 = math.exp %55 : vector<8x32xf32>
    %cst_15 = arith.constant 1.000000e+00 : f32
    %57 = vector.broadcast %cst_15 : f32 to vector<8x32xf32>
    %58 = arith.addf %57, %56 : vector<8x32xf32>
    %59 = arith.divf %57, %58 : vector<8x32xf32>
    %60 = vector.extract_strided_slice %47 {offsets = [0, 64], sizes = [8, 32], strides = [1, 1]} : vector<8x128xf32> to vector<8x32xf32>
    %61 = math.tanh %60 : vector<8x32xf32>
    %62 = vector.extract_strided_slice %47 {offsets = [0, 96], sizes = [8, 32], strides = [1, 1]} : vector<8x128xf32> to vector<8x32xf32>
    %63 = arith.negf %62 : vector<8x32xf32>
    %64 = math.exp %63 : vector<8x32xf32>
    %cst_16 = arith.constant 1.000000e+00 : f32
    %65 = vector.broadcast %cst_16 : f32 to vector<8x32xf32>
    %66 = arith.addf %65, %64 : vector<8x32xf32>
    %67 = arith.divf %65, %66 : vector<8x32xf32>
    %68 = arith.mulf %59, %6 : vector<8x32xf32>
    %69 = arith.mulf %53, %61 : vector<8x32xf32>
    %70 = arith.addf %68, %69 : vector<8x32xf32>
    %71 = math.tanh %70 : vector<8x32xf32>
    %72 = arith.mulf %67, %71 : vector<8x32xf32>
    %73 = vector.shape_cast %8 : vector<8x1xi1> to vector<8x1xi1>
    %74 = vector.broadcast %73 : vector<8x1xi1> to vector<8x32xi1>
    %75 = arith.select %74, %72, %6 : vector<8x32xi1>, vector<8x32xf32>
    %76 = vector.shape_cast %8 : vector<8x1xi1> to vector<8x1xi1>
    %77 = vector.broadcast %76 : vector<8x1xi1> to vector<8x32xi1>
    %78 = arith.select %77, %70, %6 : vector<8x32xi1>, vector<8x32xf32>
    %cst_17 = arith.constant 0.000000e+00 : f32
    %79 = vector.shape_cast %8 : vector<8x1xi1> to vector<8x1xi1>
    %80 = vector.broadcast %79 : vector<8x1xi1> to vector<8x32xi1>
    %81 = vector.broadcast %cst_17 : f32 to vector<8x32xf32>
    %82 = arith.select %80, %75, %81 : vector<8x32xi1>, vector<8x32xf32>
    %83 = vector.shape_cast %82 : vector<8x32xf32> to vector<8x1x32xf32>
    %c0_18 = arith.constant 0 : index
    %84 = arith.index_cast %c0_i32 : i32 to index
    %c0_19 = arith.constant 0 : index
    %85 = vector.load %arg6[%c0_18, %84, %c0_19] : memref<8x8x32xf32, #tpu.memory_space<vmem>>, vector<8x1x32xf32>
    tpu.vector_store %arg6[%c0_18, %84, %c0_19], %83 {strides = array<i32>} : memref<8x8x32xf32, #tpu.memory_space<vmem>>, vector<8x1x32xf32>,
    %c1_i32 = arith.constant 1 : i32
    %86 = vector.broadcast %c1_i32 : i32 to vector<8x1xi32>
    %87 = arith.cmpi slt, %86, %0 : vector<8x1xi32>
    %88 = arith.index_cast %c1_i32 : i32 to index
    %c0_20 = arith.constant 0 : index
    %c0_21 = arith.constant 0 : index
    %89 = vector.load %arg2[%88, %c0_20, %c0_21] : memref<8x8x128xf32, #tpu.memory_space<vmem>>, vector<1x8x128xf32>
    %90 = vector.shape_cast %89 : vector<1x8x128xf32> to vector<8x128xf32>
    %cst_22 = arith.constant dense<0.000000e+00> : vector<8x128xf32>
    %91 = tpu.matmul %41, %1, %cst_22 {dimension_numbers = #tpu.dot_dimension_numbers<[1], [0], [0], [1], [0, 0, 1, 1], [], []>} : vector<8x32xf32>, vector<32x128xf32>, vector<8x128xf32> -> vector<8x128xf32>
    %92 = arith.addf %90, %91 : vector<8x128xf32>
    %93 = vector.extract_strided_slice %92 {offsets = [0, 0], sizes = [8, 32], strides = [1, 1]} : vector<8x128xf32> to vector<8x32xf32>
    %94 = arith.negf %93 : vector<8x32xf32>
    %95 = math.exp %94 : vector<8x32xf32>
    %cst_23 = arith.constant 1.000000e+00 : f32
    %96 = vector.broadcast %cst_23 : f32 to vector<8x32xf32>
    %97 = arith.addf %96, %95 : vector<8x32xf32>
    %98 = arith.divf %96, %97 : vector<8x32xf32>
    %99 = vector.extract_strided_slice %92 {offsets = [0, 32], sizes = [8, 32], strides = [1, 1]} : vector<8x128xf32> to vector<8x32xf32>
    %100 = arith.negf %99 : vector<8x32xf32>
    %101 = math.exp %100 : vector<8x32xf32>
    %cst_24 = arith.constant 1.000000e+00 : f32
    %102 = vector.broadcast %cst_24 : f32 to vector<8x32xf32>
    %103 = arith.addf %102, %101 : vector<8x32xf32>
    %104 = arith.divf %102, %103 : vector<8x32xf32>
    %105 = vector.extract_strided_slice %92 {offsets = [0, 64], sizes = [8, 32], strides = [1, 1]} : vector<8x128xf32> to vector<8x32xf32>
    %106 = math.tanh %105 : vector<8x32xf32>
    %107 = vector.extract_strided_slice %92 {offsets = [0, 96], sizes = [8, 32], strides = [1, 1]} : vector<8x128xf32> to vector<8x32xf32>
    %108 = arith.negf %107 : vector<8x32xf32>
    %109 = math.exp %108 : vector<8x32xf32>
    %cst_25 = arith.constant 1.000000e+00 : f32
    %110 = vector.broadcast %cst_25 : f32 to vector<8x32xf32>
    %111 = arith.addf %110, %109 : vector<8x32xf32>
    %112 = arith.divf %110, %111 : vector<8x32xf32>
    %113 = arith.mulf %104, %44 : vector<8x32xf32>
    %114 = arith.mulf %98, %106 : vector<8x32xf32>
    %115 = arith.addf %113, %114 : vector<8x32xf32>
    %116 = math.tanh %115 : vector<8x32xf32>
    %117 = arith.mulf %112, %116 : vector<8x32xf32>
    %118 = vector.shape_cast %87 : vector<8x1xi1> to vector<8x1xi1>
    %119 = vector.broadcast %118 : vector<8x1xi1> to vector<8x32xi1>
    %120 = arith.select %119, %117, %41 : vector<8x32xi1>, vector<8x32xf32>
    %121 = vector.shape_cast %87 : vector<8x1xi1> to vector<8x1xi1>
    %122 = vector.broadcast %121 : vector<8x1xi1> to vector<8x32xi1>
    %123 = arith.select %122, %115, %44 : vector<8x32xi1>, vector<8x32xf32>
    %124 = tpu.concatenate %120, %75 in 1 : vector<8x32xf32>, vector<8x32xf32> -> vector<8x64xf32>
    %cst_26 = arith.constant dense<0.000000e+00> : vector<8x128xf32>
    %125 = tpu.matmul %124, %2, %cst_26 {dimension_numbers = #tpu.dot_dimension_numbers<[1], [0], [0], [1], [0, 0, 1, 1], [], []>} : vector<8x64xf32>, vector<64x128xf32>, vector<8x128xf32> -> vector<8x128xf32>
    %126 = arith.addf %125, %5 : vector<8x128xf32>
    %127 = vector.extract_strided_slice %126 {offsets = [0, 0], sizes = [8, 32], strides = [1, 1]} : vector<8x128xf32> to vector<8x32xf32>
    %128 = arith.negf %127 : vector<8x32xf32>
    %129 = math.exp %128 : vector<8x32xf32>
    %cst_27 = arith.constant 1.000000e+00 : f32
    %130 = vector.broadcast %cst_27 : f32 to vector<8x32xf32>
    %131 = arith.addf %130, %129 : vector<8x32xf32>
    %132 = arith.divf %130, %131 : vector<8x32xf32>
    %133 = vector.extract_strided_slice %126 {offsets = [0, 32], sizes = [8, 32], strides = [1, 1]} : vector<8x128xf32> to vector<8x32xf32>
    %134 = arith.negf %133 : vector<8x32xf32>
    %135 = math.exp %134 : vector<8x32xf32>
    %cst_28 = arith.constant 1.000000e+00 : f32
    %136 = vector.broadcast %cst_28 : f32 to vector<8x32xf32>
    %137 = arith.addf %136, %135 : vector<8x32xf32>
    %138 = arith.divf %136, %137 : vector<8x32xf32>
    %139 = vector.extract_strided_slice %126 {offsets = [0, 64], sizes = [8, 32], strides = [1, 1]} : vector<8x128xf32> to vector<8x32xf32>
    %140 = math.tanh %139 : vector<8x32xf32>
    %141 = vector.extract_strided_slice %126 {offsets = [0, 96], sizes = [8, 32], strides = [1, 1]} : vector<8x128xf32> to vector<8x32xf32>
    %142 = arith.negf %141 : vector<8x32xf32>
    %143 = math.exp %142 : vector<8x32xf32>
    %cst_29 = arith.constant 1.000000e+00 : f32
    %144 = vector.broadcast %cst_29 : f32 to vector<8x32xf32>
    %145 = arith.addf %144, %143 : vector<8x32xf32>
    %146 = arith.divf %144, %145 : vector<8x32xf32>
    %147 = arith.mulf %138, %78 : vector<8x32xf32>
    %148 = arith.mulf %132, %140 : vector<8x32xf32>
    %149 = arith.addf %147, %148 : vector<8x32xf32>
    %150 = math.tanh %149 : vector<8x32xf32>
    %151 = arith.mulf %146, %150 : vector<8x32xf32>
    %152 = vector.shape_cast %87 : vector<8x1xi1> to vector<8x1xi1>
    %153 = vector.broadcast %152 : vector<8x1xi1> to vector<8x32xi1>
    %154 = arith.select %153, %151, %75 : vector<8x32xi1>, vector<8x32xf32>
    %155 = vector.shape_cast %87 : vector<8x1xi1> to vector<8x1xi1>
    %156 = vector.broadcast %155 : vector<8x1xi1> to vector<8x32xi1>
    %157 = arith.select %156, %149, %78 : vector<8x32xi1>, vector<8x32xf32>
    %cst_30 = arith.constant 0.000000e+00 : f32
    %158 = vector.shape_cast %87 : vector<8x1xi1> to vector<8x1xi1>
    %159 = vector.broadcast %158 : vector<8x1xi1> to vector<8x32xi1>
    %160 = vector.broadcast %cst_30 : f32 to vector<8x32xf32>
    %161 = arith.select %159, %154, %160 : vector<8x32xi1>, vector<8x32xf32>
    %162 = vector.shape_cast %161 : vector<8x32xf32> to vector<8x1x32xf32>
    %c0_31 = arith.constant 0 : index
    %163 = arith.index_cast %c1_i32 : i32 to index
    %c0_32 = arith.constant 0 : index
    %164 = vector.load %arg6[%c0_31, %163, %c0_32] : memref<8x8x32xf32, #tpu.memory_space<vmem>>, vector<8x1x32xf32>
    tpu.vector_store %arg6[%c0_31, %163, %c0_32], %162 {strides = array<i32>} : memref<8x8x32xf32, #tpu.memory_space<vmem>>, vector<8x1x32xf32>,
    %c2_i32 = arith.constant 2 : i32
    %165 = vector.broadcast %c2_i32 : i32 to vector<8x1xi32>
    %166 = arith.cmpi slt, %165, %0 : vector<8x1xi32>
    %167 = arith.index_cast %c2_i32 : i32 to index
    %c0_33 = arith.constant 0 : index
    %c0_34 = arith.constant 0 : index
    %168 = vector.load %arg2[%167, %c0_33, %c0_34] : memref<8x8x128xf32, #tpu.memory_space<vmem>>, vector<1x8x128xf32>
    %169 = vector.shape_cast %168 : vector<1x8x128xf32> to vector<8x128xf32>
    %cst_35 = arith.constant dense<0.000000e+00> : vector<8x128xf32>
    %170 = tpu.matmul %120, %1, %cst_35 {dimension_numbers = #tpu.dot_dimension_numbers<[1], [0], [0], [1], [0, 0, 1, 1], [], []>} : vector<8x32xf32>, vector<32x128xf32>, vector<8x128xf32> -> vector<8x128xf32>
    %171 = arith.addf %169, %170 : vector<8x128xf32>
    %172 = vector.extract_strided_slice %171 {offsets = [0, 0], sizes = [8, 32], strides = [1, 1]} : vector<8x128xf32> to vector<8x32xf32>
    %173 = arith.negf %172 : vector<8x32xf32>
    %174 = math.exp %173 : vector<8x32xf32>
    %cst_36 = arith.constant 1.000000e+00 : f32
    %175 = vector.broadcast %cst_36 : f32 to vector<8x32xf32>
    %176 = arith.addf %175, %174 : vector<8x32xf32>
    %177 = arith.divf %175, %176 : vector<8x32xf32>
    %178 = vector.extract_strided_slice %171 {offsets = [0, 32], sizes = [8, 32], strides = [1, 1]} : vector<8x128xf32> to vector<8x32xf32>
    %179 = arith.negf %178 : vector<8x32xf32>
    %180 = math.exp %179 : vector<8x32xf32>
    %cst_37 = arith.constant 1.000000e+00 : f32
    %181 = vector.broadcast %cst_37 : f32 to vector<8x32xf32>
    %182 = arith.addf %181, %180 : vector<8x32xf32>
    %183 = arith.divf %181, %182 : vector<8x32xf32>
    %184 = vector.extract_strided_slice %171 {offsets = [0, 64], sizes = [8, 32], strides = [1, 1]} : vector<8x128xf32> to vector<8x32xf32>
    %185 = math.tanh %184 : vector<8x32xf32>
    %186 = vector.extract_strided_slice %171 {offsets = [0, 96], sizes = [8, 32], strides = [1, 1]} : vector<8x128xf32> to vector<8x32xf32>
    %187 = arith.negf %186 : vector<8x32xf32>
    %188 = math.exp %187 : vector<8x32xf32>
    %cst_38 = arith.constant 1.000000e+00 : f32
    %189 = vector.broadcast %cst_38 : f32 to vector<8x32xf32>
    %190 = arith.addf %189, %188 : vector<8x32xf32>
    %191 = arith.divf %189, %190 : vector<8x32xf32>
    %192 = arith.mulf %183, %123 : vector<8x32xf32>
    %193 = arith.mulf %177, %185 : vector<8x32xf32>
    %194 = arith.addf %192, %193 : vector<8x32xf32>
    %195 = math.tanh %194 : vector<8x32xf32>
    %196 = arith.mulf %191, %195 : vector<8x32xf32>
    %197 = vector.shape_cast %166 : vector<8x1xi1> to vector<8x1xi1>
    %198 = vector.broadcast %197 : vector<8x1xi1> to vector<8x32xi1>
    %199 = arith.select %198, %196, %120 : vector<8x32xi1>, vector<8x32xf32>
    %200 = vector.shape_cast %166 : vector<8x1xi1> to vector<8x1xi1>
    %201 = vector.broadcast %200 : vector<8x1xi1> to vector<8x32xi1>
    %202 = arith.select %201, %194, %123 : vector<8x32xi1>, vector<8x32xf32>
    %203 = tpu.concatenate %199, %154 in 1 : vector<8x32xf32>, vector<8x32xf32> -> vector<8x64xf32>
    %cst_39 = arith.constant dense<0.000000e+00> : vector<8x128xf32>
    %204 = tpu.matmul %203, %2, %cst_39 {dimension_numbers = #tpu.dot_dimension_numbers<[1], [0], [0], [1], [0, 0, 1, 1], [], []>} : vector<8x64xf32>, vector<64x128xf32>, vector<8x128xf32> -> vector<8x128xf32>
    %205 = arith.addf %204, %5 : vector<8x128xf32>
    %206 = vector.extract_strided_slice %205 {offsets = [0, 0], sizes = [8, 32], strides = [1, 1]} : vector<8x128xf32> to vector<8x32xf32>
    %207 = arith.negf %206 : vector<8x32xf32>
    %208 = math.exp %207 : vector<8x32xf32>
    %cst_40 = arith.constant 1.000000e+00 : f32
    %209 = vector.broadcast %cst_40 : f32 to vector<8x32xf32>
    %210 = arith.addf %209, %208 : vector<8x32xf32>
    %211 = arith.divf %209, %210 : vector<8x32xf32>
    %212 = vector.extract_strided_slice %205 {offsets = [0, 32], sizes = [8, 32], strides = [1, 1]} : vector<8x128xf32> to vector<8x32xf32>
    %213 = arith.negf %212 : vector<8x32xf32>
    %214 = math.exp %213 : vector<8x32xf32>
    %cst_41 = arith.constant 1.000000e+00 : f32
    %215 = vector.broadcast %cst_41 : f32 to vector<8x32xf32>
    %216 = arith.addf %215, %214 : vector<8x32xf32>
    %217 = arith.divf %215, %216 : vector<8x32xf32>
    %218 = vector.extract_strided_slice %205 {offsets = [0, 64], sizes = [8, 32], strides = [1, 1]} : vector<8x128xf32> to vector<8x32xf32>
    %219 = math.tanh %218 : vector<8x32xf32>
    %220 = vector.extract_strided_slice %205 {offsets = [0, 96], sizes = [8, 32], strides = [1, 1]} : vector<8x128xf32> to vector<8x32xf32>
    %221 = arith.negf %220 : vector<8x32xf32>
    %222 = math.exp %221 : vector<8x32xf32>
    %cst_42 = arith.constant 1.000000e+00 : f32
    %223 = vector.broadcast %cst_42 : f32 to vector<8x32xf32>
    %224 = arith.addf %223, %222 : vector<8x32xf32>
    %225 = arith.divf %223, %224 : vector<8x32xf32>
    %226 = arith.mulf %217, %157 : vector<8x32xf32>
    %227 = arith.mulf %211, %219 : vector<8x32xf32>
    %228 = arith.addf %226, %227 : vector<8x32xf32>
    %229 = math.tanh %228 : vector<8x32xf32>
    %230 = arith.mulf %225, %229 : vector<8x32xf32>
    %231 = vector.shape_cast %166 : vector<8x1xi1> to vector<8x1xi1>
    %232 = vector.broadcast %231 : vector<8x1xi1> to vector<8x32xi1>
    %233 = arith.select %232, %230, %154 : vector<8x32xi1>, vector<8x32xf32>
    %234 = vector.shape_cast %166 : vector<8x1xi1> to vector<8x1xi1>
    %235 = vector.broadcast %234 : vector<8x1xi1> to vector<8x32xi1>
    %236 = arith.select %235, %228, %157 : vector<8x32xi1>, vector<8x32xf32>
    %cst_43 = arith.constant 0.000000e+00 : f32
    %237 = vector.shape_cast %166 : vector<8x1xi1> to vector<8x1xi1>
    %238 = vector.broadcast %237 : vector<8x1xi1> to vector<8x32xi1>
    %239 = vector.broadcast %cst_43 : f32 to vector<8x32xf32>
    %240 = arith.select %238, %233, %239 : vector<8x32xi1>, vector<8x32xf32>
    %241 = vector.shape_cast %240 : vector<8x32xf32> to vector<8x1x32xf32>
    %c0_44 = arith.constant 0 : index
    %242 = arith.index_cast %c2_i32 : i32 to index
    %c0_45 = arith.constant 0 : index
    %243 = vector.load %arg6[%c0_44, %242, %c0_45] : memref<8x8x32xf32, #tpu.memory_space<vmem>>, vector<8x1x32xf32>
    tpu.vector_store %arg6[%c0_44, %242, %c0_45], %241 {strides = array<i32>} : memref<8x8x32xf32, #tpu.memory_space<vmem>>, vector<8x1x32xf32>,
    %c3_i32 = arith.constant 3 : i32
    %244 = vector.broadcast %c3_i32 : i32 to vector<8x1xi32>
    %245 = arith.cmpi slt, %244, %0 : vector<8x1xi32>
    %246 = arith.index_cast %c3_i32 : i32 to index
    %c0_46 = arith.constant 0 : index
    %c0_47 = arith.constant 0 : index
    %247 = vector.load %arg2[%246, %c0_46, %c0_47] : memref<8x8x128xf32, #tpu.memory_space<vmem>>, vector<1x8x128xf32>
    %248 = vector.shape_cast %247 : vector<1x8x128xf32> to vector<8x128xf32>
    %cst_48 = arith.constant dense<0.000000e+00> : vector<8x128xf32>
    %249 = tpu.matmul %199, %1, %cst_48 {dimension_numbers = #tpu.dot_dimension_numbers<[1], [0], [0], [1], [0, 0, 1, 1], [], []>} : vector<8x32xf32>, vector<32x128xf32>, vector<8x128xf32> -> vector<8x128xf32>
    %250 = arith.addf %248, %249 : vector<8x128xf32>
    %251 = vector.extract_strided_slice %250 {offsets = [0, 0], sizes = [8, 32], strides = [1, 1]} : vector<8x128xf32> to vector<8x32xf32>
    %252 = arith.negf %251 : vector<8x32xf32>
    %253 = math.exp %252 : vector<8x32xf32>
    %cst_49 = arith.constant 1.000000e+00 : f32
    %254 = vector.broadcast %cst_49 : f32 to vector<8x32xf32>
    %255 = arith.addf %254, %253 : vector<8x32xf32>
    %256 = arith.divf %254, %255 : vector<8x32xf32>
    %257 = vector.extract_strided_slice %250 {offsets = [0, 32], sizes = [8, 32], strides = [1, 1]} : vector<8x128xf32> to vector<8x32xf32>
    %258 = arith.negf %257 : vector<8x32xf32>
    %259 = math.exp %258 : vector<8x32xf32>
    %cst_50 = arith.constant 1.000000e+00 : f32
    %260 = vector.broadcast %cst_50 : f32 to vector<8x32xf32>
    %261 = arith.addf %260, %259 : vector<8x32xf32>
    %262 = arith.divf %260, %261 : vector<8x32xf32>
    %263 = vector.extract_strided_slice %250 {offsets = [0, 64], sizes = [8, 32], strides = [1, 1]} : vector<8x128xf32> to vector<8x32xf32>
    %264 = math.tanh %263 : vector<8x32xf32>
    %265 = vector.extract_strided_slice %250 {offsets = [0, 96], sizes = [8, 32], strides = [1, 1]} : vector<8x128xf32> to vector<8x32xf32>
    %266 = arith.negf %265 : vector<8x32xf32>
    %267 = math.exp %266 : vector<8x32xf32>
    %cst_51 = arith.constant 1.000000e+00 : f32
    %268 = vector.broadcast %cst_51 : f32 to vector<8x32xf32>
    %269 = arith.addf %268, %267 : vector<8x32xf32>
    %270 = arith.divf %268, %269 : vector<8x32xf32>
    %271 = arith.mulf %262, %202 : vector<8x32xf32>
    %272 = arith.mulf %256, %264 : vector<8x32xf32>
    %273 = arith.addf %271, %272 : vector<8x32xf32>
    %274 = math.tanh %273 : vector<8x32xf32>
    %275 = arith.mulf %270, %274 : vector<8x32xf32>
    %276 = vector.shape_cast %245 : vector<8x1xi1> to vector<8x1xi1>
    %277 = vector.broadcast %276 : vector<8x1xi1> to vector<8x32xi1>
    %278 = arith.select %277, %275, %199 : vector<8x32xi1>, vector<8x32xf32>
    %279 = vector.shape_cast %245 : vector<8x1xi1> to vector<8x1xi1>
    %280 = vector.broadcast %279 : vector<8x1xi1> to vector<8x32xi1>
    %281 = arith.select %280, %273, %202 : vector<8x32xi1>, vector<8x32xf32>
    %282 = tpu.concatenate %278, %233 in 1 : vector<8x32xf32>, vector<8x32xf32> -> vector<8x64xf32>
    %cst_52 = arith.constant dense<0.000000e+00> : vector<8x128xf32>
    %283 = tpu.matmul %282, %2, %cst_52 {dimension_numbers = #tpu.dot_dimension_numbers<[1], [0], [0], [1], [0, 0, 1, 1], [], []>} : vector<8x64xf32>, vector<64x128xf32>, vector<8x128xf32> -> vector<8x128xf32>
    %284 = arith.addf %283, %5 : vector<8x128xf32>
    %285 = vector.extract_strided_slice %284 {offsets = [0, 0], sizes = [8, 32], strides = [1, 1]} : vector<8x128xf32> to vector<8x32xf32>
    %286 = arith.negf %285 : vector<8x32xf32>
    %287 = math.exp %286 : vector<8x32xf32>
    %cst_53 = arith.constant 1.000000e+00 : f32
    %288 = vector.broadcast %cst_53 : f32 to vector<8x32xf32>
    %289 = arith.addf %288, %287 : vector<8x32xf32>
    %290 = arith.divf %288, %289 : vector<8x32xf32>
    %291 = vector.extract_strided_slice %284 {offsets = [0, 32], sizes = [8, 32], strides = [1, 1]} : vector<8x128xf32> to vector<8x32xf32>
    %292 = arith.negf %291 : vector<8x32xf32>
    %293 = math.exp %292 : vector<8x32xf32>
    %cst_54 = arith.constant 1.000000e+00 : f32
    %294 = vector.broadcast %cst_54 : f32 to vector<8x32xf32>
    %295 = arith.addf %294, %293 : vector<8x32xf32>
    %296 = arith.divf %294, %295 : vector<8x32xf32>
    %297 = vector.extract_strided_slice %284 {offsets = [0, 64], sizes = [8, 32], strides = [1, 1]} : vector<8x128xf32> to vector<8x32xf32>
    %298 = math.tanh %297 : vector<8x32xf32>
    %299 = vector.extract_strided_slice %284 {offsets = [0, 96], sizes = [8, 32], strides = [1, 1]} : vector<8x128xf32> to vector<8x32xf32>
    %300 = arith.negf %299 : vector<8x32xf32>
    %301 = math.exp %300 : vector<8x32xf32>
    %cst_55 = arith.constant 1.000000e+00 : f32
    %302 = vector.broadcast %cst_55 : f32 to vector<8x32xf32>
    %303 = arith.addf %302, %301 : vector<8x32xf32>
    %304 = arith.divf %302, %303 : vector<8x32xf32>
    %305 = arith.mulf %296, %236 : vector<8x32xf32>
    %306 = arith.mulf %290, %298 : vector<8x32xf32>
    %307 = arith.addf %305, %306 : vector<8x32xf32>
    %308 = math.tanh %307 : vector<8x32xf32>
    %309 = arith.mulf %304, %308 : vector<8x32xf32>
    %310 = vector.shape_cast %245 : vector<8x1xi1> to vector<8x1xi1>
    %311 = vector.broadcast %310 : vector<8x1xi1> to vector<8x32xi1>
    %312 = arith.select %311, %309, %233 : vector<8x32xi1>, vector<8x32xf32>
    %313 = vector.shape_cast %245 : vector<8x1xi1> to vector<8x1xi1>
    %314 = vector.broadcast %313 : vector<8x1xi1> to vector<8x32xi1>
    %315 = arith.select %314, %307, %236 : vector<8x32xi1>, vector<8x32xf32>
    %cst_56 = arith.constant 0.000000e+00 : f32
    %316 = vector.shape_cast %245 : vector<8x1xi1> to vector<8x1xi1>
    %317 = vector.broadcast %316 : vector<8x1xi1> to vector<8x32xi1>
    %318 = vector.broadcast %cst_56 : f32 to vector<8x32xf32>
    %319 = arith.select %317, %312, %318 : vector<8x32xi1>, vector<8x32xf32>
    %320 = vector.shape_cast %319 : vector<8x32xf32> to vector<8x1x32xf32>
    %c0_57 = arith.constant 0 : index
    %321 = arith.index_cast %c3_i32 : i32 to index
    %c0_58 = arith.constant 0 : index
    %322 = vector.load %arg6[%c0_57, %321, %c0_58] : memref<8x8x32xf32, #tpu.memory_space<vmem>>, vector<8x1x32xf32>
    tpu.vector_store %arg6[%c0_57, %321, %c0_58], %320 {strides = array<i32>} : memref<8x8x32xf32, #tpu.memory_space<vmem>>, vector<8x1x32xf32>,
    %c4_i32 = arith.constant 4 : i32
    %323 = vector.broadcast %c4_i32 : i32 to vector<8x1xi32>
    %324 = arith.cmpi slt, %323, %0 : vector<8x1xi32>
    %325 = arith.index_cast %c4_i32 : i32 to index
    %c0_59 = arith.constant 0 : index
    %c0_60 = arith.constant 0 : index
    %326 = vector.load %arg2[%325, %c0_59, %c0_60] : memref<8x8x128xf32, #tpu.memory_space<vmem>>, vector<1x8x128xf32>
    %327 = vector.shape_cast %326 : vector<1x8x128xf32> to vector<8x128xf32>
    %cst_61 = arith.constant dense<0.000000e+00> : vector<8x128xf32>
    %328 = tpu.matmul %278, %1, %cst_61 {dimension_numbers = #tpu.dot_dimension_numbers<[1], [0], [0], [1], [0, 0, 1, 1], [], []>} : vector<8x32xf32>, vector<32x128xf32>, vector<8x128xf32> -> vector<8x128xf32>
    %329 = arith.addf %327, %328 : vector<8x128xf32>
    %330 = vector.extract_strided_slice %329 {offsets = [0, 0], sizes = [8, 32], strides = [1, 1]} : vector<8x128xf32> to vector<8x32xf32>
    %331 = arith.negf %330 : vector<8x32xf32>
    %332 = math.exp %331 : vector<8x32xf32>
    %cst_62 = arith.constant 1.000000e+00 : f32
    %333 = vector.broadcast %cst_62 : f32 to vector<8x32xf32>
    %334 = arith.addf %333, %332 : vector<8x32xf32>
    %335 = arith.divf %333, %334 : vector<8x32xf32>
    %336 = vector.extract_strided_slice %329 {offsets = [0, 32], sizes = [8, 32], strides = [1, 1]} : vector<8x128xf32> to vector<8x32xf32>
    %337 = arith.negf %336 : vector<8x32xf32>
    %338 = math.exp %337 : vector<8x32xf32>
    %cst_63 = arith.constant 1.000000e+00 : f32
    %339 = vector.broadcast %cst_63 : f32 to vector<8x32xf32>
    %340 = arith.addf %339, %338 : vector<8x32xf32>
    %341 = arith.divf %339, %340 : vector<8x32xf32>
    %342 = vector.extract_strided_slice %329 {offsets = [0, 64], sizes = [8, 32], strides = [1, 1]} : vector<8x128xf32> to vector<8x32xf32>
    %343 = math.tanh %342 : vector<8x32xf32>
    %344 = vector.extract_strided_slice %329 {offsets = [0, 96], sizes = [8, 32], strides = [1, 1]} : vector<8x128xf32> to vector<8x32xf32>
    %345 = arith.negf %344 : vector<8x32xf32>
    %346 = math.exp %345 : vector<8x32xf32>
    %cst_64 = arith.constant 1.000000e+00 : f32
    %347 = vector.broadcast %cst_64 : f32 to vector<8x32xf32>
    %348 = arith.addf %347, %346 : vector<8x32xf32>
    %349 = arith.divf %347, %348 : vector<8x32xf32>
    %350 = arith.mulf %341, %281 : vector<8x32xf32>
    %351 = arith.mulf %335, %343 : vector<8x32xf32>
    %352 = arith.addf %350, %351 : vector<8x32xf32>
    %353 = math.tanh %352 : vector<8x32xf32>
    %354 = arith.mulf %349, %353 : vector<8x32xf32>
    %355 = vector.shape_cast %324 : vector<8x1xi1> to vector<8x1xi1>
    %356 = vector.broadcast %355 : vector<8x1xi1> to vector<8x32xi1>
    %357 = arith.select %356, %354, %278 : vector<8x32xi1>, vector<8x32xf32>
    %358 = vector.shape_cast %324 : vector<8x1xi1> to vector<8x1xi1>
    %359 = vector.broadcast %358 : vector<8x1xi1> to vector<8x32xi1>
    %360 = arith.select %359, %352, %281 : vector<8x32xi1>, vector<8x32xf32>
    %361 = tpu.concatenate %357, %312 in 1 : vector<8x32xf32>, vector<8x32xf32> -> vector<8x64xf32>
    %cst_65 = arith.constant dense<0.000000e+00> : vector<8x128xf32>
    %362 = tpu.matmul %361, %2, %cst_65 {dimension_numbers = #tpu.dot_dimension_numbers<[1], [0], [0], [1], [0, 0, 1, 1], [], []>} : vector<8x64xf32>, vector<64x128xf32>, vector<8x128xf32> -> vector<8x128xf32>
    %363 = arith.addf %362, %5 : vector<8x128xf32>
    %364 = vector.extract_strided_slice %363 {offsets = [0, 0], sizes = [8, 32], strides = [1, 1]} : vector<8x128xf32> to vector<8x32xf32>
    %365 = arith.negf %364 : vector<8x32xf32>
    %366 = math.exp %365 : vector<8x32xf32>
    %cst_66 = arith.constant 1.000000e+00 : f32
    %367 = vector.broadcast %cst_66 : f32 to vector<8x32xf32>
    %368 = arith.addf %367, %366 : vector<8x32xf32>
    %369 = arith.divf %367, %368 : vector<8x32xf32>
    %370 = vector.extract_strided_slice %363 {offsets = [0, 32], sizes = [8, 32], strides = [1, 1]} : vector<8x128xf32> to vector<8x32xf32>
    %371 = arith.negf %370 : vector<8x32xf32>
    %372 = math.exp %371 : vector<8x32xf32>
    %cst_67 = arith.constant 1.000000e+00 : f32
    %373 = vector.broadcast %cst_67 : f32 to vector<8x32xf32>
    %374 = arith.addf %373, %372 : vector<8x32xf32>
    %375 = arith.divf %373, %374 : vector<8x32xf32>
    %376 = vector.extract_strided_slice %363 {offsets = [0, 64], sizes = [8, 32], strides = [1, 1]} : vector<8x128xf32> to vector<8x32xf32>
    %377 = math.tanh %376 : vector<8x32xf32>
    %378 = vector.extract_strided_slice %363 {offsets = [0, 96], sizes = [8, 32], strides = [1, 1]} : vector<8x128xf32> to vector<8x32xf32>
    %379 = arith.negf %378 : vector<8x32xf32>
    %380 = math.exp %379 : vector<8x32xf32>
    %cst_68 = arith.constant 1.000000e+00 : f32
    %381 = vector.broadcast %cst_68 : f32 to vector<8x32xf32>
    %382 = arith.addf %381, %380 : vector<8x32xf32>
    %383 = arith.divf %381, %382 : vector<8x32xf32>
    %384 = arith.mulf %375, %315 : vector<8x32xf32>
    %385 = arith.mulf %369, %377 : vector<8x32xf32>
    %386 = arith.addf %384, %385 : vector<8x32xf32>
    %387 = math.tanh %386 : vector<8x32xf32>
    %388 = arith.mulf %383, %387 : vector<8x32xf32>
    %389 = vector.shape_cast %324 : vector<8x1xi1> to vector<8x1xi1>
    %390 = vector.broadcast %389 : vector<8x1xi1> to vector<8x32xi1>
    %391 = arith.select %390, %388, %312 : vector<8x32xi1>, vector<8x32xf32>
    %392 = vector.shape_cast %324 : vector<8x1xi1> to vector<8x1xi1>
    %393 = vector.broadcast %392 : vector<8x1xi1> to vector<8x32xi1>
    %394 = arith.select %393, %386, %315 : vector<8x32xi1>, vector<8x32xf32>
    %cst_69 = arith.constant 0.000000e+00 : f32
    %395 = vector.shape_cast %324 : vector<8x1xi1> to vector<8x1xi1>
    %396 = vector.broadcast %395 : vector<8x1xi1> to vector<8x32xi1>
    %397 = vector.broadcast %cst_69 : f32 to vector<8x32xf32>
    %398 = arith.select %396, %391, %397 : vector<8x32xi1>, vector<8x32xf32>
    %399 = vector.shape_cast %398 : vector<8x32xf32> to vector<8x1x32xf32>
    %c0_70 = arith.constant 0 : index
    %400 = arith.index_cast %c4_i32 : i32 to index
    %c0_71 = arith.constant 0 : index
    %401 = vector.load %arg6[%c0_70, %400, %c0_71] : memref<8x8x32xf32, #tpu.memory_space<vmem>>, vector<8x1x32xf32>
    tpu.vector_store %arg6[%c0_70, %400, %c0_71], %399 {strides = array<i32>} : memref<8x8x32xf32, #tpu.memory_space<vmem>>, vector<8x1x32xf32>,
    %c5_i32 = arith.constant 5 : i32
    %402 = vector.broadcast %c5_i32 : i32 to vector<8x1xi32>
    %403 = arith.cmpi slt, %402, %0 : vector<8x1xi32>
    %404 = arith.index_cast %c5_i32 : i32 to index
    %c0_72 = arith.constant 0 : index
    %c0_73 = arith.constant 0 : index
    %405 = vector.load %arg2[%404, %c0_72, %c0_73] : memref<8x8x128xf32, #tpu.memory_space<vmem>>, vector<1x8x128xf32>
    %406 = vector.shape_cast %405 : vector<1x8x128xf32> to vector<8x128xf32>
    %cst_74 = arith.constant dense<0.000000e+00> : vector<8x128xf32>
    %407 = tpu.matmul %357, %1, %cst_74 {dimension_numbers = #tpu.dot_dimension_numbers<[1], [0], [0], [1], [0, 0, 1, 1], [], []>} : vector<8x32xf32>, vector<32x128xf32>, vector<8x128xf32> -> vector<8x128xf32>
    %408 = arith.addf %406, %407 : vector<8x128xf32>
    %409 = vector.extract_strided_slice %408 {offsets = [0, 0], sizes = [8, 32], strides = [1, 1]} : vector<8x128xf32> to vector<8x32xf32>
    %410 = arith.negf %409 : vector<8x32xf32>
    %411 = math.exp %410 : vector<8x32xf32>
    %cst_75 = arith.constant 1.000000e+00 : f32
    %412 = vector.broadcast %cst_75 : f32 to vector<8x32xf32>
    %413 = arith.addf %412, %411 : vector<8x32xf32>
    %414 = arith.divf %412, %413 : vector<8x32xf32>
    %415 = vector.extract_strided_slice %408 {offsets = [0, 32], sizes = [8, 32], strides = [1, 1]} : vector<8x128xf32> to vector<8x32xf32>
    %416 = arith.negf %415 : vector<8x32xf32>
    %417 = math.exp %416 : vector<8x32xf32>
    %cst_76 = arith.constant 1.000000e+00 : f32
    %418 = vector.broadcast %cst_76 : f32 to vector<8x32xf32>
    %419 = arith.addf %418, %417 : vector<8x32xf32>
    %420 = arith.divf %418, %419 : vector<8x32xf32>
    %421 = vector.extract_strided_slice %408 {offsets = [0, 64], sizes = [8, 32], strides = [1, 1]} : vector<8x128xf32> to vector<8x32xf32>
    %422 = math.tanh %421 : vector<8x32xf32>
    %423 = vector.extract_strided_slice %408 {offsets = [0, 96], sizes = [8, 32], strides = [1, 1]} : vector<8x128xf32> to vector<8x32xf32>
    %424 = arith.negf %423 : vector<8x32xf32>
    %425 = math.exp %424 : vector<8x32xf32>
    %cst_77 = arith.constant 1.000000e+00 : f32
    %426 = vector.broadcast %cst_77 : f32 to vector<8x32xf32>
    %427 = arith.addf %426, %425 : vector<8x32xf32>
    %428 = arith.divf %426, %427 : vector<8x32xf32>
    %429 = arith.mulf %420, %360 : vector<8x32xf32>
    %430 = arith.mulf %414, %422 : vector<8x32xf32>
    %431 = arith.addf %429, %430 : vector<8x32xf32>
    %432 = math.tanh %431 : vector<8x32xf32>
    %433 = arith.mulf %428, %432 : vector<8x32xf32>
    %434 = vector.shape_cast %403 : vector<8x1xi1> to vector<8x1xi1>
    %435 = vector.broadcast %434 : vector<8x1xi1> to vector<8x32xi1>
    %436 = arith.select %435, %433, %357 : vector<8x32xi1>, vector<8x32xf32>
    %437 = vector.shape_cast %403 : vector<8x1xi1> to vector<8x1xi1>
    %438 = vector.broadcast %437 : vector<8x1xi1> to vector<8x32xi1>
    %439 = arith.select %438, %431, %360 : vector<8x32xi1>, vector<8x32xf32>
    %440 = tpu.concatenate %436, %391 in 1 : vector<8x32xf32>, vector<8x32xf32> -> vector<8x64xf32>
    %cst_78 = arith.constant dense<0.000000e+00> : vector<8x128xf32>
    %441 = tpu.matmul %440, %2, %cst_78 {dimension_numbers = #tpu.dot_dimension_numbers<[1], [0], [0], [1], [0, 0, 1, 1], [], []>} : vector<8x64xf32>, vector<64x128xf32>, vector<8x128xf32> -> vector<8x128xf32>
    %442 = arith.addf %441, %5 : vector<8x128xf32>
    %443 = vector.extract_strided_slice %442 {offsets = [0, 0], sizes = [8, 32], strides = [1, 1]} : vector<8x128xf32> to vector<8x32xf32>
    %444 = arith.negf %443 : vector<8x32xf32>
    %445 = math.exp %444 : vector<8x32xf32>
    %cst_79 = arith.constant 1.000000e+00 : f32
    %446 = vector.broadcast %cst_79 : f32 to vector<8x32xf32>
    %447 = arith.addf %446, %445 : vector<8x32xf32>
    %448 = arith.divf %446, %447 : vector<8x32xf32>
    %449 = vector.extract_strided_slice %442 {offsets = [0, 32], sizes = [8, 32], strides = [1, 1]} : vector<8x128xf32> to vector<8x32xf32>
    %450 = arith.negf %449 : vector<8x32xf32>
    %451 = math.exp %450 : vector<8x32xf32>
    %cst_80 = arith.constant 1.000000e+00 : f32
    %452 = vector.broadcast %cst_80 : f32 to vector<8x32xf32>
    %453 = arith.addf %452, %451 : vector<8x32xf32>
    %454 = arith.divf %452, %453 : vector<8x32xf32>
    %455 = vector.extract_strided_slice %442 {offsets = [0, 64], sizes = [8, 32], strides = [1, 1]} : vector<8x128xf32> to vector<8x32xf32>
    %456 = math.tanh %455 : vector<8x32xf32>
    %457 = vector.extract_strided_slice %442 {offsets = [0, 96], sizes = [8, 32], strides = [1, 1]} : vector<8x128xf32> to vector<8x32xf32>
    %458 = arith.negf %457 : vector<8x32xf32>
    %459 = math.exp %458 : vector<8x32xf32>
    %cst_81 = arith.constant 1.000000e+00 : f32
    %460 = vector.broadcast %cst_81 : f32 to vector<8x32xf32>
    %461 = arith.addf %460, %459 : vector<8x32xf32>
    %462 = arith.divf %460, %461 : vector<8x32xf32>
    %463 = arith.mulf %454, %394 : vector<8x32xf32>
    %464 = arith.mulf %448, %456 : vector<8x32xf32>
    %465 = arith.addf %463, %464 : vector<8x32xf32>
    %466 = math.tanh %465 : vector<8x32xf32>
    %467 = arith.mulf %462, %466 : vector<8x32xf32>
    %468 = vector.shape_cast %403 : vector<8x1xi1> to vector<8x1xi1>
    %469 = vector.broadcast %468 : vector<8x1xi1> to vector<8x32xi1>
    %470 = arith.select %469, %467, %391 : vector<8x32xi1>, vector<8x32xf32>
    %471 = vector.shape_cast %403 : vector<8x1xi1> to vector<8x1xi1>
    %472 = vector.broadcast %471 : vector<8x1xi1> to vector<8x32xi1>
    %473 = arith.select %472, %465, %394 : vector<8x32xi1>, vector<8x32xf32>
    %cst_82 = arith.constant 0.000000e+00 : f32
    %474 = vector.shape_cast %403 : vector<8x1xi1> to vector<8x1xi1>
    %475 = vector.broadcast %474 : vector<8x1xi1> to vector<8x32xi1>
    %476 = vector.broadcast %cst_82 : f32 to vector<8x32xf32>
    %477 = arith.select %475, %470, %476 : vector<8x32xi1>, vector<8x32xf32>
    %478 = vector.shape_cast %477 : vector<8x32xf32> to vector<8x1x32xf32>
    %c0_83 = arith.constant 0 : index
    %479 = arith.index_cast %c5_i32 : i32 to index
    %c0_84 = arith.constant 0 : index
    %480 = vector.load %arg6[%c0_83, %479, %c0_84] : memref<8x8x32xf32, #tpu.memory_space<vmem>>, vector<8x1x32xf32>
    tpu.vector_store %arg6[%c0_83, %479, %c0_84], %478 {strides = array<i32>} : memref<8x8x32xf32, #tpu.memory_space<vmem>>, vector<8x1x32xf32>,
    %c6_i32 = arith.constant 6 : i32
    %481 = vector.broadcast %c6_i32 : i32 to vector<8x1xi32>
    %482 = arith.cmpi slt, %481, %0 : vector<8x1xi32>
    %483 = arith.index_cast %c6_i32 : i32 to index
    %c0_85 = arith.constant 0 : index
    %c0_86 = arith.constant 0 : index
    %484 = vector.load %arg2[%483, %c0_85, %c0_86] : memref<8x8x128xf32, #tpu.memory_space<vmem>>, vector<1x8x128xf32>
    %485 = vector.shape_cast %484 : vector<1x8x128xf32> to vector<8x128xf32>
    %cst_87 = arith.constant dense<0.000000e+00> : vector<8x128xf32>
    %486 = tpu.matmul %436, %1, %cst_87 {dimension_numbers = #tpu.dot_dimension_numbers<[1], [0], [0], [1], [0, 0, 1, 1], [], []>} : vector<8x32xf32>, vector<32x128xf32>, vector<8x128xf32> -> vector<8x128xf32>
    %487 = arith.addf %485, %486 : vector<8x128xf32>
    %488 = vector.extract_strided_slice %487 {offsets = [0, 0], sizes = [8, 32], strides = [1, 1]} : vector<8x128xf32> to vector<8x32xf32>
    %489 = arith.negf %488 : vector<8x32xf32>
    %490 = math.exp %489 : vector<8x32xf32>
    %cst_88 = arith.constant 1.000000e+00 : f32
    %491 = vector.broadcast %cst_88 : f32 to vector<8x32xf32>
    %492 = arith.addf %491, %490 : vector<8x32xf32>
    %493 = arith.divf %491, %492 : vector<8x32xf32>
    %494 = vector.extract_strided_slice %487 {offsets = [0, 32], sizes = [8, 32], strides = [1, 1]} : vector<8x128xf32> to vector<8x32xf32>
    %495 = arith.negf %494 : vector<8x32xf32>
    %496 = math.exp %495 : vector<8x32xf32>
    %cst_89 = arith.constant 1.000000e+00 : f32
    %497 = vector.broadcast %cst_89 : f32 to vector<8x32xf32>
    %498 = arith.addf %497, %496 : vector<8x32xf32>
    %499 = arith.divf %497, %498 : vector<8x32xf32>
    %500 = vector.extract_strided_slice %487 {offsets = [0, 64], sizes = [8, 32], strides = [1, 1]} : vector<8x128xf32> to vector<8x32xf32>
    %501 = math.tanh %500 : vector<8x32xf32>
    %502 = vector.extract_strided_slice %487 {offsets = [0, 96], sizes = [8, 32], strides = [1, 1]} : vector<8x128xf32> to vector<8x32xf32>
    %503 = arith.negf %502 : vector<8x32xf32>
    %504 = math.exp %503 : vector<8x32xf32>
    %cst_90 = arith.constant 1.000000e+00 : f32
    %505 = vector.broadcast %cst_90 : f32 to vector<8x32xf32>
    %506 = arith.addf %505, %504 : vector<8x32xf32>
    %507 = arith.divf %505, %506 : vector<8x32xf32>
    %508 = arith.mulf %499, %439 : vector<8x32xf32>
    %509 = arith.mulf %493, %501 : vector<8x32xf32>
    %510 = arith.addf %508, %509 : vector<8x32xf32>
    %511 = math.tanh %510 : vector<8x32xf32>
    %512 = arith.mulf %507, %511 : vector<8x32xf32>
    %513 = vector.shape_cast %482 : vector<8x1xi1> to vector<8x1xi1>
    %514 = vector.broadcast %513 : vector<8x1xi1> to vector<8x32xi1>
    %515 = arith.select %514, %512, %436 : vector<8x32xi1>, vector<8x32xf32>
    %516 = vector.shape_cast %482 : vector<8x1xi1> to vector<8x1xi1>
    %517 = vector.broadcast %516 : vector<8x1xi1> to vector<8x32xi1>
    %518 = arith.select %517, %510, %439 : vector<8x32xi1>, vector<8x32xf32>
    %519 = tpu.concatenate %515, %470 in 1 : vector<8x32xf32>, vector<8x32xf32> -> vector<8x64xf32>
    %cst_91 = arith.constant dense<0.000000e+00> : vector<8x128xf32>
    %520 = tpu.matmul %519, %2, %cst_91 {dimension_numbers = #tpu.dot_dimension_numbers<[1], [0], [0], [1], [0, 0, 1, 1], [], []>} : vector<8x64xf32>, vector<64x128xf32>, vector<8x128xf32> -> vector<8x128xf32>
    %521 = arith.addf %520, %5 : vector<8x128xf32>
    %522 = vector.extract_strided_slice %521 {offsets = [0, 0], sizes = [8, 32], strides = [1, 1]} : vector<8x128xf32> to vector<8x32xf32>
    %523 = arith.negf %522 : vector<8x32xf32>
    %524 = math.exp %523 : vector<8x32xf32>
    %cst_92 = arith.constant 1.000000e+00 : f32
    %525 = vector.broadcast %cst_92 : f32 to vector<8x32xf32>
    %526 = arith.addf %525, %524 : vector<8x32xf32>
    %527 = arith.divf %525, %526 : vector<8x32xf32>
    %528 = vector.extract_strided_slice %521 {offsets = [0, 32], sizes = [8, 32], strides = [1, 1]} : vector<8x128xf32> to vector<8x32xf32>
    %529 = arith.negf %528 : vector<8x32xf32>
    %530 = math.exp %529 : vector<8x32xf32>
    %cst_93 = arith.constant 1.000000e+00 : f32
    %531 = vector.broadcast %cst_93 : f32 to vector<8x32xf32>
    %532 = arith.addf %531, %530 : vector<8x32xf32>
    %533 = arith.divf %531, %532 : vector<8x32xf32>
    %534 = vector.extract_strided_slice %521 {offsets = [0, 64], sizes = [8, 32], strides = [1, 1]} : vector<8x128xf32> to vector<8x32xf32>
    %535 = math.tanh %534 : vector<8x32xf32>
    %536 = vector.extract_strided_slice %521 {offsets = [0, 96], sizes = [8, 32], strides = [1, 1]} : vector<8x128xf32> to vector<8x32xf32>
    %537 = arith.negf %536 : vector<8x32xf32>
    %538 = math.exp %537 : vector<8x32xf32>
    %cst_94 = arith.constant 1.000000e+00 : f32
    %539 = vector.broadcast %cst_94 : f32 to vector<8x32xf32>
    %540 = arith.addf %539, %538 : vector<8x32xf32>
    %541 = arith.divf %539, %540 : vector<8x32xf32>
    %542 = arith.mulf %533, %473 : vector<8x32xf32>
    %543 = arith.mulf %527, %535 : vector<8x32xf32>
    %544 = arith.addf %542, %543 : vector<8x32xf32>
    %545 = math.tanh %544 : vector<8x32xf32>
    %546 = arith.mulf %541, %545 : vector<8x32xf32>
    %547 = vector.shape_cast %482 : vector<8x1xi1> to vector<8x1xi1>
    %548 = vector.broadcast %547 : vector<8x1xi1> to vector<8x32xi1>
    %549 = arith.select %548, %546, %470 : vector<8x32xi1>, vector<8x32xf32>
    %550 = vector.shape_cast %482 : vector<8x1xi1> to vector<8x1xi1>
    %551 = vector.broadcast %550 : vector<8x1xi1> to vector<8x32xi1>
    %552 = arith.select %551, %544, %473 : vector<8x32xi1>, vector<8x32xf32>
    %cst_95 = arith.constant 0.000000e+00 : f32
    %553 = vector.shape_cast %482 : vector<8x1xi1> to vector<8x1xi1>
    %554 = vector.broadcast %553 : vector<8x1xi1> to vector<8x32xi1>
    %555 = vector.broadcast %cst_95 : f32 to vector<8x32xf32>
    %556 = arith.select %554, %549, %555 : vector<8x32xi1>, vector<8x32xf32>
    %557 = vector.shape_cast %556 : vector<8x32xf32> to vector<8x1x32xf32>
    %c0_96 = arith.constant 0 : index
    %558 = arith.index_cast %c6_i32 : i32 to index
    %c0_97 = arith.constant 0 : index
    %559 = vector.load %arg6[%c0_96, %558, %c0_97] : memref<8x8x32xf32, #tpu.memory_space<vmem>>, vector<8x1x32xf32>
    tpu.vector_store %arg6[%c0_96, %558, %c0_97], %557 {strides = array<i32>} : memref<8x8x32xf32, #tpu.memory_space<vmem>>, vector<8x1x32xf32>,
    %c7_i32 = arith.constant 7 : i32
    %560 = vector.broadcast %c7_i32 : i32 to vector<8x1xi32>
    %561 = arith.cmpi slt, %560, %0 : vector<8x1xi32>
    %562 = arith.index_cast %c7_i32 : i32 to index
    %c0_98 = arith.constant 0 : index
    %c0_99 = arith.constant 0 : index
    %563 = vector.load %arg2[%562, %c0_98, %c0_99] : memref<8x8x128xf32, #tpu.memory_space<vmem>>, vector<1x8x128xf32>
    %564 = vector.shape_cast %563 : vector<1x8x128xf32> to vector<8x128xf32>
    %cst_100 = arith.constant dense<0.000000e+00> : vector<8x128xf32>
    %565 = tpu.matmul %515, %1, %cst_100 {dimension_numbers = #tpu.dot_dimension_numbers<[1], [0], [0], [1], [0, 0, 1, 1], [], []>} : vector<8x32xf32>, vector<32x128xf32>, vector<8x128xf32> -> vector<8x128xf32>
    %566 = arith.addf %564, %565 : vector<8x128xf32>
    %567 = vector.extract_strided_slice %566 {offsets = [0, 0], sizes = [8, 32], strides = [1, 1]} : vector<8x128xf32> to vector<8x32xf32>
    %568 = arith.negf %567 : vector<8x32xf32>
    %569 = math.exp %568 : vector<8x32xf32>
    %cst_101 = arith.constant 1.000000e+00 : f32
    %570 = vector.broadcast %cst_101 : f32 to vector<8x32xf32>
    %571 = arith.addf %570, %569 : vector<8x32xf32>
    %572 = arith.divf %570, %571 : vector<8x32xf32>
    %573 = vector.extract_strided_slice %566 {offsets = [0, 32], sizes = [8, 32], strides = [1, 1]} : vector<8x128xf32> to vector<8x32xf32>
    %574 = arith.negf %573 : vector<8x32xf32>
    %575 = math.exp %574 : vector<8x32xf32>
    %cst_102 = arith.constant 1.000000e+00 : f32
    %576 = vector.broadcast %cst_102 : f32 to vector<8x32xf32>
    %577 = arith.addf %576, %575 : vector<8x32xf32>
    %578 = arith.divf %576, %577 : vector<8x32xf32>
    %579 = vector.extract_strided_slice %566 {offsets = [0, 64], sizes = [8, 32], strides = [1, 1]} : vector<8x128xf32> to vector<8x32xf32>
    %580 = math.tanh %579 : vector<8x32xf32>
    %581 = vector.extract_strided_slice %566 {offsets = [0, 96], sizes = [8, 32], strides = [1, 1]} : vector<8x128xf32> to vector<8x32xf32>
    %582 = arith.negf %581 : vector<8x32xf32>
    %583 = math.exp %582 : vector<8x32xf32>
    %cst_103 = arith.constant 1.000000e+00 : f32
    %584 = vector.broadcast %cst_103 : f32 to vector<8x32xf32>
    %585 = arith.addf %584, %583 : vector<8x32xf32>
    %586 = arith.divf %584, %585 : vector<8x32xf32>
    %587 = arith.mulf %578, %518 : vector<8x32xf32>
    %588 = arith.mulf %572, %580 : vector<8x32xf32>
    %589 = arith.addf %587, %588 : vector<8x32xf32>
    %590 = math.tanh %589 : vector<8x32xf32>
    %591 = arith.mulf %586, %590 : vector<8x32xf32>
    %592 = vector.shape_cast %561 : vector<8x1xi1> to vector<8x1xi1>
    %593 = vector.broadcast %592 : vector<8x1xi1> to vector<8x32xi1>
    %594 = arith.select %593, %591, %515 : vector<8x32xi1>, vector<8x32xf32>
    %595 = vector.shape_cast %561 : vector<8x1xi1> to vector<8x1xi1>
    %596 = vector.broadcast %595 : vector<8x1xi1> to vector<8x32xi1>
    %597 = arith.select %596, %589, %518 : vector<8x32xi1>, vector<8x32xf32>
    %598 = tpu.concatenate %594, %549 in 1 : vector<8x32xf32>, vector<8x32xf32> -> vector<8x64xf32>
    %cst_104 = arith.constant dense<0.000000e+00> : vector<8x128xf32>
    %599 = tpu.matmul %598, %2, %cst_104 {dimension_numbers = #tpu.dot_dimension_numbers<[1], [0], [0], [1], [0, 0, 1, 1], [], []>} : vector<8x64xf32>, vector<64x128xf32>, vector<8x128xf32> -> vector<8x128xf32>
    %600 = arith.addf %599, %5 : vector<8x128xf32>
    %601 = vector.extract_strided_slice %600 {offsets = [0, 0], sizes = [8, 32], strides = [1, 1]} : vector<8x128xf32> to vector<8x32xf32>
    %602 = arith.negf %601 : vector<8x32xf32>
    %603 = math.exp %602 : vector<8x32xf32>
    %cst_105 = arith.constant 1.000000e+00 : f32
    %604 = vector.broadcast %cst_105 : f32 to vector<8x32xf32>
    %605 = arith.addf %604, %603 : vector<8x32xf32>
    %606 = arith.divf %604, %605 : vector<8x32xf32>
    %607 = vector.extract_strided_slice %600 {offsets = [0, 32], sizes = [8, 32], strides = [1, 1]} : vector<8x128xf32> to vector<8x32xf32>
    %608 = arith.negf %607 : vector<8x32xf32>
    %609 = math.exp %608 : vector<8x32xf32>
    %cst_106 = arith.constant 1.000000e+00 : f32
    %610 = vector.broadcast %cst_106 : f32 to vector<8x32xf32>
    %611 = arith.addf %610, %609 : vector<8x32xf32>
    %612 = arith.divf %610, %611 : vector<8x32xf32>
    %613 = vector.extract_strided_slice %600 {offsets = [0, 64], sizes = [8, 32], strides = [1, 1]} : vector<8x128xf32> to vector<8x32xf32>
    %614 = math.tanh %613 : vector<8x32xf32>
    %615 = vector.extract_strided_slice %600 {offsets = [0, 96], sizes = [8, 32], strides = [1, 1]} : vector<8x128xf32> to vector<8x32xf32>
    %616 = arith.negf %615 : vector<8x32xf32>
    %617 = math.exp %616 : vector<8x32xf32>
    %cst_107 = arith.constant 1.000000e+00 : f32
    %618 = vector.broadcast %cst_107 : f32 to vector<8x32xf32>
    %619 = arith.addf %618, %617 : vector<8x32xf32>
    %620 = arith.divf %618, %619 : vector<8x32xf32>
    %621 = arith.mulf %612, %552 : vector<8x32xf32>
    %622 = arith.mulf %606, %614 : vector<8x32xf32>
    %623 = arith.addf %621, %622 : vector<8x32xf32>
    %624 = math.tanh %623 : vector<8x32xf32>
    %625 = arith.mulf %620, %624 : vector<8x32xf32>
    %626 = vector.shape_cast %561 : vector<8x1xi1> to vector<8x1xi1>
    %627 = vector.broadcast %626 : vector<8x1xi1> to vector<8x32xi1>
    %628 = arith.select %627, %625, %549 : vector<8x32xi1>, vector<8x32xf32>
    %629 = vector.shape_cast %561 : vector<8x1xi1> to vector<8x1xi1>
    %630 = vector.broadcast %629 : vector<8x1xi1> to vector<8x32xi1>
    %631 = arith.select %630, %623, %552 : vector<8x32xi1>, vector<8x32xf32>
    %cst_108 = arith.constant 0.000000e+00 : f32
    %632 = vector.shape_cast %561 : vector<8x1xi1> to vector<8x1xi1>
    %633 = vector.broadcast %632 : vector<8x1xi1> to vector<8x32xi1>
    %634 = vector.broadcast %cst_108 : f32 to vector<8x32xf32>
    %635 = arith.select %633, %628, %634 : vector<8x32xi1>, vector<8x32xf32>
    %636 = vector.shape_cast %635 : vector<8x32xf32> to vector<8x1x32xf32>
    %c0_109 = arith.constant 0 : index
    %637 = arith.index_cast %c7_i32 : i32 to index
    %c0_110 = arith.constant 0 : index
    %638 = vector.load %arg6[%c0_109, %637, %c0_110] : memref<8x8x32xf32, #tpu.memory_space<vmem>>, vector<8x1x32xf32>
    tpu.vector_store %arg6[%c0_109, %637, %c0_110], %636 {strides = array<i32>} : memref<8x8x32xf32, #tpu.memory_space<vmem>>, vector<8x1x32xf32>,
    %c8_i32 = arith.constant 8 : i32
    %c0_111 = arith.constant 0 : index
    %c0_112 = arith.constant 0 : index
    %c0_113 = arith.constant 0 : index
    %639 = vector.load %arg7[%c0_111, %c0_112, %c0_113] : memref<2x8x32xf32, #tpu.memory_space<vmem>>, vector<1x8x32xf32>
    %640 = vector.shape_cast %639 : vector<1x8x32xf32> to vector<8x32xf32>
    %641 = vector.shape_cast %594 : vector<8x32xf32> to vector<1x8x32xf32>
    tpu.vector_store %arg7[%c0_111, %c0_112, %c0_113], %641 {strides = array<i32>} : memref<2x8x32xf32, #tpu.memory_space<vmem>>, vector<1x8x32xf32>,
    %c1 = arith.constant 1 : index
    %c0_114 = arith.constant 0 : index
    %c0_115 = arith.constant 0 : index
    %642 = vector.load %arg7[%c1, %c0_114, %c0_115] : memref<2x8x32xf32, #tpu.memory_space<vmem>>, vector<1x8x32xf32>
    %643 = vector.shape_cast %642 : vector<1x8x32xf32> to vector<8x32xf32>
    %644 = vector.shape_cast %628 : vector<8x32xf32> to vector<1x8x32xf32>
    tpu.vector_store %arg7[%c1, %c0_114, %c0_115], %644 {strides = array<i32>} : memref<2x8x32xf32, #tpu.memory_space<vmem>>, vector<1x8x32xf32>,
    %c0_116 = arith.constant 0 : index
    %c0_117 = arith.constant 0 : index
    %c0_118 = arith.constant 0 : index
    %645 = vector.load %arg8[%c0_116, %c0_117, %c0_118] : memref<2x8x32xf32, #tpu.memory_space<vmem>>, vector<1x8x32xf32>
    %646 = vector.shape_cast %645 : vector<1x8x32xf32> to vector<8x32xf32>
    %647 = vector.shape_cast %597 : vector<8x32xf32> to vector<1x8x32xf32>
    tpu.vector_store %arg8[%c0_116, %c0_117, %c0_118], %647 {strides = array<i32>} : memref<2x8x32xf32, #tpu.memory_space<vmem>>, vector<1x8x32xf32>,
    %c1_119 = arith.constant 1 : index
    %c0_120 = arith.constant 0 : index
    %c0_121 = arith.constant 0 : index
    %648 = vector.load %arg8[%c1_119, %c0_120, %c0_121] : memref<2x8x32xf32, #tpu.memory_space<vmem>>, vector<1x8x32xf32>
    %649 = vector.shape_cast %648 : vector<1x8x32xf32> to vector<8x32xf32>
    %650 = vector.shape_cast %631 : vector<8x32xf32> to vector<1x8x32xf32>
    tpu.vector_store %arg8[%c1_119, %c0_120, %c0_121], %650 {strides = array<i32>} : memref<2x8x32xf32, #tpu.memory_space<vmem>>, vector<1x8x32xf32>,
    return
  }
  func.func @transform_0(%arg0: i32) -> (i32, i32) {
    %c0_i32 = arith.constant 0 : i32
    %c0_i32_0 = arith.constant 0 : i32
    return %arg0, %c0_i32 : i32, i32
  }
  func.func @transform_1(%arg0: i32) -> (i32, i32, i32) {
    %c0_i32 = arith.constant 0 : i32
    %c0_i32_0 = arith.constant 0 : i32
    %c0_i32_1 = arith.constant 0 : i32
    return %c0_i32, %arg0, %c0_i32_0 : i32, i32, i32
  }
  func.func @transform_2(%arg0: i32) -> (i32, i32) {
    %c0_i32 = arith.constant 0 : i32
    %c0_i32_0 = arith.constant 0 : i32
    %c0_i32_1 = arith.constant 0 : i32
    return %c0_i32, %c0_i32_0 : i32, i32
  }
  func.func @transform_3(%arg0: i32) -> (i32, i32) {
    %c0_i32 = arith.constant 0 : i32
    %c0_i32_0 = arith.constant 0 : i32
    %c0_i32_1 = arith.constant 0 : i32
    return %c0_i32, %c0_i32_0 : i32, i32
  }
  func.func @transform_4(%arg0: i32) -> (i32, i32) {
    %c0_i32 = arith.constant 0 : i32
    %c0_i32_0 = arith.constant 0 : i32
    %c0_i32_1 = arith.constant 0 : i32
    return %c0_i32, %c0_i32_0 : i32, i32
  }
  func.func @transform_5(%arg0: i32) -> (i32, i32, i32) {
    %c0_i32 = arith.constant 0 : i32
    %c0_i32_0 = arith.constant 0 : i32
    %c0_i32_1 = arith.constant 0 : i32
    return %arg0, %c0_i32, %c0_i32_0 : i32, i32, i32
  }
  func.func @transform_6(%arg0: i32) -> (i32, i32, i32) {
    %c0_i32 = arith.constant 0 : i32
    %c0_i32_0 = arith.constant 0 : i32
    %c0_i32_1 = arith.constant 0 : i32
    return %c0_i32, %arg0, %c0_i32_0 : i32, i32, i32
  }
  func.func @transform_7(%arg0: i32) -> (i32, i32, i32) {
    %c0_i32 = arith.constant 0 : i32
    %c0_i32_0 = arith.constant 0 : i32
    %c0_i32_1 = arith.constant 0 : i32
    return %c0_i32, %arg0, %c0_i32_0 : i32, i32, i32
  }
}

</mosaic_0001>

<llo_original>
// kernel: tpu_custom_call.1
$region0: #{tpu_custom_call.1}
  #allocation0 [shape = 'u32[]', space=smem, size = 0x4, offset = 0x4, fixed_abs, tag = 'smem constant byte address 0x4 - core index']
  #allocation1 [shape = 'u32[72,128]{1,0:T(1,128)}', space=vmem, size = 0x9000, scoped, tag = 'internal scratch']
  %s0 = inlined_call_operand.vmem [shape: s32[8,1], index: 0, kind: input, shape index: {}]
  %s1 = inlined_call_operand.hbm [shape: f32[8,8,128], index: 1, kind: input, shape index: {}]
  %s2 = inlined_call_operand.hbm [shape: f32[32,128], index: 2, kind: input, shape index: {}]
  %s3 = inlined_call_operand.hbm [shape: f32[64,128], index: 3, kind: input, shape index: {}]
  %s4 = inlined_call_operand.vmem [shape: f32[1,128], index: 4, kind: input, shape index: {}]
  %s5 = inlined_call_operand.hbm [shape: f32[8,8,32], index: 5, kind: output, shape index: {0}]
  %s6 = inlined_call_operand.hbm [shape: f32[2,8,32], index: 6, kind: output, shape index: {1}]
  %s7 = inlined_call_operand.hbm [shape: f32[2,8,32], index: 7, kind: output, shape index: {2}]
  %8 = xla_tuple %s5, %s6, %s7
  %s9 = sld [smem:[#allocation0]]
  $region58: #{tpu_custom_call.1} parent=0
    _
  %s11 = ssub.s32 1, %s9
  %s12 = scalar_select 0, %s11, %s9
  $region1: #{tpu_custom_call.1} parent=0
    #allocation2 [shape = 'u8[32768]{0}', space=vmem, size = 0x8000, scoped, tag = 'input window, operand 1, single buffered']
    #allocation3 [shape = 's32[1]{0}', space=sflag, size = 0x4, scoped, tag = 'scoped memory for tpu_custom_call.1']
    #allocation4 [shape = 's32[1]{0}', space=sflag, size = 0x4, scoped, tag = 'scoped memory for tpu_custom_call.1']
    #allocation5 [shape = 'u8[16384]{0}', space=vmem, size = 0x4000, scoped, tag = 'input window, operand 2, single buffered']
    #allocation6 [shape = 's32[1]{0}', space=sflag, size = 0x4, scoped, tag = 'scoped memory for tpu_custom_call.1']
    #allocation7 [shape = 'u8[32768]{0}', space=vmem, size = 0x8000, scoped, tag = 'input window, operand 3, single buffered']
    #allocation8 [shape = 'u8[32768]{0}', space=vmem, size = 0x8000, scoped, tag = 'output window, operand 0, single buffered']
    #allocation9 [shape = 'u8[8192]{0}', space=vmem, size = 0x2000, scoped, tag = 'output window, operand 1, single buffered']
    #allocation10 [shape = 's32[1]{0}', space=sflag, size = 0x4, scoped, tag = 'scoped memory for tpu_custom_call.1']
    #allocation11 [shape = 'u8[8192]{0}', space=vmem, size = 0x2000, scoped, tag = 'output window, operand 2, single buffered']
    %13 = vsyncpa [#allocation3], 0
    %14 = vsyncpa [#allocation6], 0
    %15 = vsyncpa [#allocation4], 0
    %16 = vsyncpa [#allocation10], 0
    // Predicated region
    $region2: #{tpu_custom_call.1} parent=1 // pred_check
      _
    $region3: #{tpu_custom_call.1} parent=1 // pred_check_branch
      %18 = sbr.rel (0) target = $region5
    $region4: #{tpu_custom_call.1} parent=1 // pred_region
      _
    $region5: #{tpu_custom_call.1} parent=1 // pred_fallthru
      _
    // Predicated region
    $region6: #{tpu_custom_call.1} parent=1 // pred_check
      _
    $region7: #{tpu_custom_call.1} parent=1 // pred_check_branch
      %20 = sbr.rel (0) target = $region9
    $region8: #{tpu_custom_call.1} parent=1 // pred_region
      %22 = vsyncadd [#allocation3], 0
      %s23 = sshll.u32 %s1, 4
      %s24 = int_to_ptr.hbm [resolvable:$true] %s23
      %s25 = sshll.u32 [#allocation2], 4
      %s26 = int_to_ptr.vmem [resolvable:$true] %s25
      %31 = dma.hbm_to_vmem [thread:$0]  %s24, 1024, %s26, [#allocation3], 128, 128, 8
    $region9: #{tpu_custom_call.1} parent=1 // pred_fallthru
      _
    // Predicated region
    $region10: #{tpu_custom_call.1} parent=1 // pred_check
      _
    $region11: #{tpu_custom_call.1} parent=1 // pred_check_branch
      %33 = sbr.rel (0) target = $region13
    $region12: #{tpu_custom_call.1} parent=1 // pred_region
      %35 = vsyncadd [#allocation6], 0
      %s36 = sshll.u32 %s2, 4
      %s37 = int_to_ptr.hbm [resolvable:$true] %s36
      %s38 = sshll.u32 [#allocation5], 4
      %s39 = int_to_ptr.vmem [resolvable:$true] %s38
      %44 = dma.hbm_to_vmem [thread:$0]  %s37, 512, %s39, [#allocation6], 128, 128, 8
    $region13: #{tpu_custom_call.1} parent=1 // pred_fallthru
      _
    // Predicated region
    $region14: #{tpu_custom_call.1} parent=1 // pred_check
      _
    $region15: #{tpu_custom_call.1} parent=1 // pred_check_branch
      %46 = sbr.rel (0) target = $region17
    $region16: #{tpu_custom_call.1} parent=1 // pred_region
      %48 = vsyncadd [#allocation6], 0
      %s49 = sshll.u32 %s3, 4
      %s50 = int_to_ptr.hbm [resolvable:$true] %s49
      %s51 = sshll.u32 [#allocation7], 4
      %s52 = int_to_ptr.vmem [resolvable:$true] %s51
      %57 = dma.hbm_to_vmem [thread:$0]  %s50, 1024, %s52, [#allocation6], 128, 128, 8
    $region17: #{tpu_custom_call.1} parent=1 // pred_fallthru
      _
    // Predicated region
    $region18: #{tpu_custom_call.1} parent=1 // pred_check
      _
    $region19: #{tpu_custom_call.1} parent=1 // pred_check_branch
      %59 = sbr.rel (0) target = $region21
    $region20: #{tpu_custom_call.1} parent=1 // pred_region
      _
    $region21: #{tpu_custom_call.1} parent=1 // pred_fallthru
      _
    // Predicated region
    $region22: #{tpu_custom_call.1} parent=1 // pred_check
      _
    $region23: #{tpu_custom_call.1} parent=1 // pred_check_branch
      %61 = sbr.rel (0) target = $region25
    $region24: #{tpu_custom_call.1} parent=1 // pred_region
      %63 = dma.done [#allocation3], 1024
    $region25: #{tpu_custom_call.1} parent=1 // pred_fallthru
      _
    // Predicated region
    $region26: #{tpu_custom_call.1} parent=1 // pred_check
      _
    $region27: #{tpu_custom_call.1} parent=1 // pred_check_branch
      %65 = sbr.rel (0) target = $region29
    $region28: #{tpu_custom_call.1} parent=1 // pred_region
      %67 = dma.done [#allocation6], 512
    $region29: #{tpu_custom_call.1} parent=1 // pred_fallthru
      _
    // Predicated region
    $region30: #{tpu_custom_call.1} parent=1 // pred_check
      _
    $region31: #{tpu_custom_call.1} parent=1 // pred_check_branch
      %69 = sbr.rel (0) target = $region33
    $region32: #{tpu_custom_call.1} parent=1 // pred_region
      %71 = dma.done [#allocation6], 1024
    $region33: #{tpu_custom_call.1} parent=1 // pred_fallthru
      _
    %v72 = vld [vmem:[%s0] sm:$0xff]
    %v73 = vld [vmem:[#allocation5] sm:$0xff]
    %v74 = vld [vmem:[#allocation5 + $0x8] sm:$0xff]
    %v75 = vld [vmem:[#allocation5 + $0x10] sm:$0xff]
    %v76 = vld [vmem:[#allocation5 + $0x18] sm:$0xff]
    %v77 = vld [vmem:[#allocation7] sm:$0xff]
    %v78 = vld [vmem:[#allocation7 + $0x8] sm:$0xff]
    %v79 = vld [vmem:[#allocation7 + $0x10] sm:$0xff]
    %v80 = vld [vmem:[#allocation7 + $0x18] sm:$0xff]
    %v81 = vld [vmem:[#allocation7 + $0x20] sm:$0xff]
    %v82 = vld [vmem:[#allocation7 + $0x28] sm:$0xff]
    %v83 = vld [vmem:[#allocation7 + $0x30] sm:$0xff]
    %v84 = vld [vmem:[#allocation7 + $0x38] sm:$0xff]
    %v85 = vld [vmem:[%s4] sm:$0x1]
    %v87 = vperm.slane %v85, 0
    %vm89 = vcmp.gt.s32.totalorder %v72, 0
    %v90 = vld [vmem:[#allocation2] sm:$0xff]
    %vm91 = vcmask 261120
    %v93 = vsel %vm91, 0.0, 0
    %95 = vmatpush.msra.mxu0 0.0
    %96 = vmatpush.msra.mxu0 0.0
    %97 = vmatpush.msra.mxu0 0.0
    %98 = vmatpush.msra.mxu0 0.0
    %99 = vmatpush.msra.mxu0 0.0
    %100 = vmatpush.msra.mxu0 0.0
    %101 = vmatpush.msra.mxu0 0.0
    %102 = vmatpush.msra.mxu0 0.0
    %103 = vmatpush.msra.mxu0 0.0
    %104 = vmatpush.msra.mxu0 0.0
    %105 = vmatpush.msra.mxu0 0.0
    %106 = vmatpush.msra.mxu0 0.0
    %107 = vmatpush.msra.mxu0 %v76
    %108 = vmatpush.msra.mxu0 %v75
    %109 = vmatpush.msra.mxu0 %v74
    %110 = vmatpush.msra.mxu0 %v73
    %111 = vmatmul.f32.gmra.mxu0 %v93
    %v112 = vpop.f32.mrf.mxu0
    %v113 = vadd.f32 0.0, %v112
    %114 = vdwg.mxu0
    %v115 = vadd.f32 %v90, %v113
    %v116 = vxor.u32 %v115, 2147483648
    %v117 = vmul.f32 %v116, 1.442695
    %v118 = vpow.pop %v117
    %v119 = vadd.f32 %v118, 1.0
    %v120 = vrcp.pop %v119
    %v121 = vmul.f32 %v119, %v120
    %v122 = vsub.f32 1.0, %v121
    %v123 = vmul.f32 %v120, %v122
    %v124 = vadd.f32 %v120, %v123
    %vm125 = vweird.f32 %v119
    %vm126 = vweird.f32 %v120
    %vm127 = vmor %vm125, %vm126
    %v128 = vsel %vm127, %v120, %v124
    %v129 = vand.u32 2147483647, %v119
    %vm130 = vcmp.eq.f32.partialorder %v129, 8.507059e+37
    %v131 = vand.u32 %v119, 2147483648
    %v132 = vor.u32 1.1754944e-38, %v131
    %v133 = vsel %vm130, %v132, %v128
    %v134 = vmul.f32 1.0, %v133
    %v135 = vtanh.pop %v115
    %v136 = vmul.f32 %v134, 0.0
    %138 = vrot.lane.b32.xlu0 %v135, 64
    %v139 = vpop.permute.xlu0 %138
    %v141 = vmul.f32 %v134, %v139
    %143 = vrot.lane.b32.xlu0 %v141, 32
    %v144 = vpop.permute.xlu0 %143
    %v146 = vadd.f32 %v136, %v144
    %v147 = vtanh.pop %v146
    %149 = vrot.lane.b32.xlu0 %v147, 64
    %v150 = vpop.permute.xlu0 %149
    %v152 = vmul.f32 %v134, %v150
    %v153 = vsel %vm89, 1, 0
    %154 = vset.pattern.permute.xlu0 0
    %155 = vperm.xlu0 %154, %v153
    %v156 = vpop.permute.xlu0 %155
    %vm157 = vcmp.eq.s32.totalorder %v156, 1
    %v158 = vsel %vm157, %v152, 0.0
    %v159 = vsel %vm157, %v146, 0.0
    %161 = vrot.lane.b32.xlu0 %v158, 32
    %v162 = vpop.permute.xlu0 %161
    %v164 = vsel %vm91, %v162, 0.0
    %vm165 = vcmask 523264
    %v167 = vsel %vm165, %v164, 0
    %169 = vmatpush.msra.mxu0 0.0
    %170 = vmatpush.msra.mxu0 0.0
    %171 = vmatpush.msra.mxu0 0.0
    %172 = vmatpush.msra.mxu0 0.0
    %173 = vmatpush.msra.mxu0 0.0
    %174 = vmatpush.msra.mxu0 0.0
    %175 = vmatpush.msra.mxu0 0.0
    %176 = vmatpush.msra.mxu0 0.0
    %177 = vmatpush.msra.mxu0 %v84
    %178 = vmatpush.msra.mxu0 %v83
    %179 = vmatpush.msra.mxu0 %v82
    %180 = vmatpush.msra.mxu0 %v81
    %181 = vmatpush.msra.mxu0 %v80
    %182 = vmatpush.msra.mxu0 %v79
    %183 = vmatpush.msra.mxu0 %v78
    %184 = vmatpush.msra.mxu0 %v77
    %185 = vmatmul.f32.gmra.mxu0 %v167
    %v186 = vpop.f32.mrf.mxu0
    %v187 = vadd.f32 %v87, %v186
    %188 = vdwg.mxu0
    %v189 = vxor.u32 %v187, 2147483648
    %v190 = vmul.f32 %v189, 1.442695
    %v191 = vpow.pop %v190
    %v192 = vadd.f32 %v191, 1.0
    %v193 = vrcp.pop %v192
    %v194 = vmul.f32 %v192, %v193
    %v195 = vsub.f32 1.0, %v194
    %v196 = vmul.f32 %v193, %v195
    %v197 = vadd.f32 %v193, %v196
    %vm198 = vweird.f32 %v192
    %vm199 = vweird.f32 %v193
    %vm200 = vmor %vm198, %vm199
    %v201 = vsel %vm200, %v193, %v197
    %v202 = vand.u32 2147483647, %v192
    %vm203 = vcmp.eq.f32.partialorder %v202, 8.507059e+37
    %v204 = vand.u32 %v192, 2147483648
    %v205 = vor.u32 1.1754944e-38, %v204
    %v206 = vsel %vm203, %v205, %v201
    %v207 = vmul.f32 1.0, %v206
    %v208 = vtanh.pop %v187
    %v209 = vmul.f32 %v207, 0.0
    %211 = vrot.lane.b32.xlu0 %v208, 64
    %v212 = vpop.permute.xlu0 %211
    %v214 = vmul.f32 %v207, %v212
    %216 = vrot.lane.b32.xlu0 %v214, 32
    %v217 = vpop.permute.xlu0 %216
    %v219 = vadd.f32 %v209, %v217
    %v220 = vtanh.pop %v219
    %222 = vrot.lane.b32.xlu0 %v220, 64
    %v223 = vpop.permute.xlu0 %222
    %v225 = vmul.f32 %v207, %v223
    %v226 = vsel %vm157, %v225, 0.0
    %v227 = vsel %vm157, %v219, 0.0
    %v229 = vrot.slane %v226, 1
    %v230 = vrot.slane %v226, 2
    %v231 = vrot.slane %v226, 3
    %v232 = vrot.slane %v226, 4
    %v233 = vrot.slane %v226, 5
    %v234 = vrot.slane %v226, 6
    %v235 = vrot.slane %v226, 7
    %v236 = vperm.slane %v226, 0
    %v237 = vperm.slane %v229, 0
    %v238 = vperm.slane %v230, 0
    %v239 = vperm.slane %v231, 0
    %v240 = vperm.slane %v232, 0
    %v241 = vperm.slane %v233, 0
    %v242 = vperm.slane %v234, 0
    %v243 = vperm.slane %v235, 0
    %244 = vrot.lane.b32.xlu0 %v236, 32
    %v245 = vpop.permute.xlu0 %244
    %246 = vrot.lane.b32.xlu0 %v237, 32
    %v247 = vpop.permute.xlu0 %246
    %248 = vrot.lane.b32.xlu0 %v238, 32
    %v249 = vpop.permute.xlu0 %248
    %250 = vrot.lane.b32.xlu0 %v239, 32
    %v251 = vpop.permute.xlu0 %250
    %252 = vrot.lane.b32.xlu0 %v240, 32
    %v253 = vpop.permute.xlu0 %252
    %254 = vrot.lane.b32.xlu0 %v241, 32
    %v255 = vpop.permute.xlu0 %254
    %256 = vrot.lane.b32.xlu0 %v242, 32
    %v257 = vpop.permute.xlu0 %256
    %258 = vrot.lane.b32.xlu0 %v243, 32
    %v259 = vpop.permute.xlu0 %258
    %vm268 = vcmask 253952
    %269 = vst.msk [vmem:[#allocation8] sm:$0x1] %vm268, %v245
    %270 = vst.msk [vmem:[#allocation8 + $0x8] sm:$0x1] %vm268, %v247
    %271 = vst.msk [vmem:[#allocation8 + $0x10] sm:$0x1] %vm268, %v249
    %272 = vst.msk [vmem:[#allocation8 + $0x18] sm:$0x1] %vm268, %v251
    %273 = vst.msk [vmem:[#allocation8 + $0x20] sm:$0x1] %vm268, %v253
    %274 = vst.msk [vmem:[#allocation8 + $0x28] sm:$0x1] %vm268, %v255
    %275 = vst.msk [vmem:[#allocation8 + $0x30] sm:$0x1] %vm268, %v257
    %276 = vst.msk [vmem:[#allocation8 + $0x38] sm:$0x1] %vm268, %v259
    %vm277 = vcmp.gt.s32.totalorder %v72, 1
    %s278 = scalar_lea.vmem [#allocation2], 8
    %v279 = vld [vmem:[%s278] sm:$0xff]
    %v280 = vsel %vm91, %v162, 0
    %282 = vmatpush.msra.mxu0 0.0
    %283 = vmatpush.msra.mxu0 0.0
    %284 = vmatpush.msra.mxu0 0.0
    %285 = vmatpush.msra.mxu0 0.0
    %286 = vmatpush.msra.mxu0 0.0
    %287 = vmatpush.msra.mxu0 0.0
    %288 = vmatpush.msra.mxu0 0.0
    %289 = vmatpush.msra.mxu0 0.0
    %290 = vmatpush.msra.mxu0 0.0
    %291 = vmatpush.msra.mxu0 0.0
    %292 = vmatpush.msra.mxu0 0.0
    %293 = vmatpush.msra.mxu0 0.0
    %294 = vmatpush.msra.mxu0 %v76
    %295 = vmatpush.msra.mxu0 %v75
    %296 = vmatpush.msra.mxu0 %v74
    %297 = vmatpush.msra.mxu0 %v73
    %298 = vmatmul.f32.gmra.mxu0 %v280
    %v299 = vpop.f32.mrf.mxu0
    %v300 = vadd.f32 0.0, %v299
    %301 = vdwg.mxu0
    %v302 = vadd.f32 %v279, %v300
    %v303 = vxor.u32 %v302, 2147483648
    %v304 = vmul.f32 %v303, 1.442695
    %v305 = vpow.pop %v304
    %v306 = vadd.f32 %v305, 1.0
    %v307 = vrcp.pop %v306
    %v308 = vmul.f32 %v306, %v307
    %v309 = vsub.f32 1.0, %v308
    %v310 = vmul.f32 %v307, %v309
    %v311 = vadd.f32 %v307, %v310
    %vm312 = vweird.f32 %v306
    %vm313 = vweird.f32 %v307
    %vm314 = vmor %vm312, %vm313
    %v315 = vsel %vm314, %v307, %v311
    %v316 = vand.u32 2147483647, %v306
    %vm317 = vcmp.eq.f32.partialorder %v316, 8.507059e+37
    %v318 = vand.u32 %v306, 2147483648
    %v319 = vor.u32 1.1754944e-38, %v318
    %v320 = vsel %vm317, %v319, %v315
    %v321 = vmul.f32 1.0, %v320
    %v322 = vtanh.pop %v302
    %v323 = vmul.f32 %v321, %v159
    %325 = vrot.lane.b32.xlu0 %v322, 64
    %v326 = vpop.permute.xlu0 %325
    %v328 = vmul.f32 %v321, %v326
    %330 = vrot.lane.b32.xlu0 %v328, 32
    %v331 = vpop.permute.xlu0 %330
    %v333 = vadd.f32 %v323, %v331
    %v334 = vtanh.pop %v333
    %336 = vrot.lane.b32.xlu0 %v334, 64
    %v337 = vpop.permute.xlu0 %336
    %v339 = vmul.f32 %v321, %v337
    %v340 = vsel %vm277, 1, 0
    %341 = vset.pattern.permute.xlu0 0
    %342 = vperm.xlu0 %341, %v340
    %v343 = vpop.permute.xlu0 %342
    %vm344 = vcmp.eq.s32.totalorder %v343, 1
    %v345 = vsel %vm344, %v339, %v158
    %v346 = vsel %vm344, %v333, %v159
    %348 = vrot.lane.b32.xlu0 %v345, 32
    %v349 = vpop.permute.xlu0 %348
    %351 = vrot.lane.b32.xlu0 %v226, 64
    %v352 = vpop.permute.xlu0 %351
    %v354 = vsel %vm91, %v349, %v352
    %v356 = vsel %vm165, %v354, 0
    %358 = vmatpush.msra.mxu0 0.0
    %359 = vmatpush.msra.mxu0 0.0
    %360 = vmatpush.msra.mxu0 0.0
    %361 = vmatpush.msra.mxu0 0.0
    %362 = vmatpush.msra.mxu0 0.0
    %363 = vmatpush.msra.mxu0 0.0
    %364 = vmatpush.msra.mxu0 0.0
    %365 = vmatpush.msra.mxu0 0.0
    %366 = vmatpush.msra.mxu0 %v84
    %367 = vmatpush.msra.mxu0 %v83
    %368 = vmatpush.msra.mxu0 %v82
    %369 = vmatpush.msra.mxu0 %v81
    %370 = vmatpush.msra.mxu0 %v80
    %371 = vmatpush.msra.mxu0 %v79
    %372 = vmatpush.msra.mxu0 %v78
    %373 = vmatpush.msra.mxu0 %v77
    %374 = vmatmul.f32.gmra.mxu0 %v356
    %v375 = vpop.f32.mrf.mxu0
    %v376 = vadd.f32 %v87, %v375
    %377 = vdwg.mxu0
    %v378 = vxor.u32 %v376, 2147483648
    %v379 = vmul.f32 %v378, 1.442695
    %v380 = vpow.pop %v379
    %v381 = vadd.f32 %v380, 1.0
    %v382 = vrcp.pop %v381
    %v383 = vmul.f32 %v381, %v382
    %v384 = vsub.f32 1.0, %v383
    %v385 = vmul.f32 %v382, %v384
    %v386 = vadd.f32 %v382, %v385
    %vm387 = vweird.f32 %v381
    %vm388 = vweird.f32 %v382
    %vm389 = vmor %vm387, %vm388
    %v390 = vsel %vm389, %v382, %v386
    %v391 = vand.u32 2147483647, %v381
    %vm392 = vcmp.eq.f32.partialorder %v391, 8.507059e+37
    %v393 = vand.u32 %v381, 2147483648
    %v394 = vor.u32 1.1754944e-38, %v393
    %v395 = vsel %vm392, %v394, %v390
    %v396 = vmul.f32 1.0, %v395
    %v397 = vtanh.pop %v376
    %v398 = vmul.f32 %v396, %v227
    %400 = vrot.lane.b32.xlu0 %v397, 64
    %v401 = vpop.permute.xlu0 %400
    %v403 = vmul.f32 %v396, %v401
    %405 = vrot.lane.b32.xlu0 %v403, 32
    %v406 = vpop.permute.xlu0 %405
    %v408 = vadd.f32 %v398, %v406
    %v409 = vtanh.pop %v408
    %411 = vrot.lane.b32.xlu0 %v409, 64
    %v412 = vpop.permute.xlu0 %411
    %v414 = vmul.f32 %v396, %v412
    %v415 = vsel %vm344, %v414, %v226
    %v416 = vsel %vm344, %v408, %v227
    %v417 = vsel %vm344, %v414, 0.0
    %v419 = vrot.slane %v417, 1
    %v420 = vrot.slane %v417, 2
    %v421 = vrot.slane %v417, 3
    %v422 = vrot.slane %v417, 4
    %v423 = vrot.slane %v417, 5
    %v424 = vrot.slane %v417, 6
    %v425 = vrot.slane %v417, 7
    %v426 = vperm.slane %v417, 0
    %v427 = vperm.slane %v419, 0
    %v428 = vperm.slane %v420, 0
    %v429 = vperm.slane %v421, 0
    %v430 = vperm.slane %v422, 0
    %v431 = vperm.slane %v423, 0
    %v432 = vperm.slane %v424, 0
    %v433 = vperm.slane %v425, 0
    %434 = vrot.lane.b32.xlu0 %v426, 32
    %v435 = vpop.permute.xlu0 %434
    %436 = vrot.lane.b32.xlu0 %v427, 32
    %v437 = vpop.permute.xlu0 %436
    %438 = vrot.lane.b32.xlu0 %v428, 32
    %v439 = vpop.permute.xlu0 %438
    %440 = vrot.lane.b32.xlu0 %v429, 32
    %v441 = vpop.permute.xlu0 %440
    %442 = vrot.lane.b32.xlu0 %v430, 32
    %v443 = vpop.permute.xlu0 %442
    %444 = vrot.lane.b32.xlu0 %v431, 32
    %v445 = vpop.permute.xlu0 %444
    %446 = vrot.lane.b32.xlu0 %v432, 32
    %v447 = vpop.permute.xlu0 %446
    %448 = vrot.lane.b32.xlu0 %v433, 32
    %v449 = vpop.permute.xlu0 %448
    %458 = vst.msk [vmem:[#allocation8 + $0x1] sm:$0x1] %vm268, %v435
    %459 = vst.msk [vmem:[#allocation8 + $0x9] sm:$0x1] %vm268, %v437
    %460 = vst.msk [vmem:[#allocation8 + $0x11] sm:$0x1] %vm268, %v439
    %461 = vst.msk [vmem:[#allocation8 + $0x19] sm:$0x1] %vm268, %v441
    %462 = vst.msk [vmem:[#allocation8 + $0x21] sm:$0x1] %vm268, %v443
    %463 = vst.msk [vmem:[#allocation8 + $0x29] sm:$0x1] %vm268, %v445
    %464 = vst.msk [vmem:[#allocation8 + $0x31] sm:$0x1] %vm268, %v447
    %465 = vst.msk [vmem:[#allocation8 + $0x39] sm:$0x1] %vm268, %v449
    %vm466 = vcmp.gt.s32.totalorder %v72, 2
    %s467 = scalar_lea.vmem [#allocation2], 16
    %v468 = vld [vmem:[%s467] sm:$0xff]
    %v469 = vsel %vm91, %v349, 0
    %471 = vmatpush.msra.mxu0 0.0
    %472 = vmatpush.msra.mxu0 0.0
    %473 = vmatpush.msra.mxu0 0.0
    %474 = vmatpush.msra.mxu0 0.0
    %475 = vmatpush.msra.mxu0 0.0
    %476 = vmatpush.msra.mxu0 0.0
    %477 = vmatpush.msra.mxu0 0.0
    %478 = vmatpush.msra.mxu0 0.0
    %479 = vmatpush.msra.mxu0 0.0
    %480 = vmatpush.msra.mxu0 0.0
    %481 = vmatpush.msra.mxu0 0.0
    %482 = vmatpush.msra.mxu0 0.0
    %483 = vmatpush.msra.mxu0 %v76
    %484 = vmatpush.msra.mxu0 %v75
    %485 = vmatpush.msra.mxu0 %v74
    %486 = vmatpush.msra.mxu0 %v73
    %487 = vmatmul.f32.gmra.mxu0 %v469
    %v488 = vpop.f32.mrf.mxu0
    %v489 = vadd.f32 0.0, %v488
    %490 = vdwg.mxu0
    %v491 = vadd.f32 %v468, %v489
    %v492 = vxor.u32 %v491, 2147483648
    %v493 = vmul.f32 %v492, 1.442695
    %v494 = vpow.pop %v493
    %v495 = vadd.f32 %v494, 1.0
    %v496 = vrcp.pop %v495
    %v497 = vmul.f32 %v495, %v496
    %v498 = vsub.f32 1.0, %v497
    %v499 = vmul.f32 %v496, %v498
    %v500 = vadd.f32 %v496, %v499
    %vm501 = vweird.f32 %v495
    %vm502 = vweird.f32 %v496
    %vm503 = vmor %vm501, %vm502
    %v504 = vsel %vm503, %v496, %v500
    %v505 = vand.u32 2147483647, %v495
    %vm506 = vcmp.eq.f32.partialorder %v505, 8.507059e+37
    %v507 = vand.u32 %v495, 2147483648
    %v508 = vor.u32 1.1754944e-38, %v507
    %v509 = vsel %vm506, %v508, %v504
    %v510 = vmul.f32 1.0, %v509
    %v511 = vtanh.pop %v491
    %v512 = vmul.f32 %v510, %v346
    %514 = vrot.lane.b32.xlu0 %v511, 64
    %v515 = vpop.permute.xlu0 %514
    %v517 = vmul.f32 %v510, %v515
    %519 = vrot.lane.b32.xlu0 %v517, 32
    %v520 = vpop.permute.xlu0 %519
    %v522 = vadd.f32 %v512, %v520
    %v523 = vtanh.pop %v522
    %525 = vrot.lane.b32.xlu0 %v523, 64
    %v526 = vpop.permute.xlu0 %525
    %v528 = vmul.f32 %v510, %v526
    %v529 = vsel %vm466, 1, 0
    %530 = vset.pattern.permute.xlu0 0
    %531 = vperm.xlu0 %530, %v529
    %v532 = vpop.permute.xlu0 %531
    %vm533 = vcmp.eq.s32.totalorder %v532, 1
    %v534 = vsel %vm533, %v528, %v345
    %v535 = vsel %vm533, %v522, %v346
    %537 = vrot.lane.b32.xlu0 %v534, 32
    %v538 = vpop.permute.xlu0 %537
    %541 = vrot.lane.b32.xlu0 %v415, 64
    %v542 = vpop.permute.xlu0 %541
    %v544 = vsel %vm91, %v538, %v542
    %v546 = vsel %vm165, %v544, 0
    %548 = vmatpush.msra.mxu0 0.0
    %549 = vmatpush.msra.mxu0 0.0
    %550 = vmatpush.msra.mxu0 0.0
    %551 = vmatpush.msra.mxu0 0.0
    %552 = vmatpush.msra.mxu0 0.0
    %553 = vmatpush.msra.mxu0 0.0
    %554 = vmatpush.msra.mxu0 0.0
    %555 = vmatpush.msra.mxu0 0.0
    %556 = vmatpush.msra.mxu0 %v84
    %557 = vmatpush.msra.mxu0 %v83
    %558 = vmatpush.msra.mxu0 %v82
    %559 = vmatpush.msra.mxu0 %v81
    %560 = vmatpush.msra.mxu0 %v80
    %561 = vmatpush.msra.mxu0 %v79
    %562 = vmatpush.msra.mxu0 %v78
    %563 = vmatpush.msra.mxu0 %v77
    %564 = vmatmul.f32.gmra.mxu0 %v546
    %v565 = vpop.f32.mrf.mxu0
    %v566 = vadd.f32 %v87, %v565
    %567 = vdwg.mxu0
    %v568 = vxor.u32 %v566, 2147483648
    %v569 = vmul.f32 %v568, 1.442695
    %v570 = vpow.pop %v569
    %v571 = vadd.f32 %v570, 1.0
    %v572 = vrcp.pop %v571
    %v573 = vmul.f32 %v571, %v572
    %v574 = vsub.f32 1.0, %v573
    %v575 = vmul.f32 %v572, %v574
    %v576 = vadd.f32 %v572, %v575
    %vm577 = vweird.f32 %v571
    %vm578 = vweird.f32 %v572
    %vm579 = vmor %vm577, %vm578
    %v580 = vsel %vm579, %v572, %v576
    %v581 = vand.u32 2147483647, %v571
    %vm582 = vcmp.eq.f32.partialorder %v581, 8.507059e+37
    %v583 = vand.u32 %v571, 2147483648
    %v584 = vor.u32 1.1754944e-38, %v583
    %v585 = vsel %vm582, %v584, %v580
    %v586 = vmul.f32 1.0, %v585
    %v587 = vtanh.pop %v566
    %v588 = vmul.f32 %v586, %v416
    %590 = vrot.lane.b32.xlu0 %v587, 64
    %v591 = vpop.permute.xlu0 %590
    %v593 = vmul.f32 %v586, %v591
    %595 = vrot.lane.b32.xlu0 %v593, 32
    %v596 = vpop.permute.xlu0 %595
    %v598 = vadd.f32 %v588, %v596
    %v599 = vtanh.pop %v598
    %601 = vrot.lane.b32.xlu0 %v599, 64
    %v602 = vpop.permute.xlu0 %601
    %v604 = vmul.f32 %v586, %v602
    %v605 = vsel %vm533, %v604, %v415
    %v606 = vsel %vm533, %v598, %v416
    %v607 = vsel %vm533, %v604, 0.0
    %v609 = vrot.slane %v607, 1
    %v610 = vrot.slane %v607, 2
    %v611 = vrot.slane %v607, 3
    %v612 = vrot.slane %v607, 4
    %v613 = vrot.slane %v607, 5
    %v614 = vrot.slane %v607, 6
    %v615 = vrot.slane %v607, 7
    %v616 = vperm.slane %v607, 0
    %v617 = vperm.slane %v609, 0
    %v618 = vperm.slane %v610, 0
    %v619 = vperm.slane %v611, 0
    %v620 = vperm.slane %v612, 0
    %v621 = vperm.slane %v613, 0
    %v622 = vperm.slane %v614, 0
    %v623 = vperm.slane %v615, 0
    %624 = vrot.lane.b32.xlu0 %v616, 32
    %v625 = vpop.permute.xlu0 %624
    %626 = vrot.lane.b32.xlu0 %v617, 32
    %v627 = vpop.permute.xlu0 %626
    %628 = vrot.lane.b32.xlu0 %v618, 32
    %v629 = vpop.permute.xlu0 %628
    %630 = vrot.lane.b32.xlu0 %v619, 32
    %v631 = vpop.permute.xlu0 %630
    %632 = vrot.lane.b32.xlu0 %v620, 32
    %v633 = vpop.permute.xlu0 %632
    %634 = vrot.lane.b32.xlu0 %v621, 32
    %v635 = vpop.permute.xlu0 %634
    %636 = vrot.lane.b32.xlu0 %v622, 32
    %v637 = vpop.permute.xlu0 %636
    %638 = vrot.lane.b32.xlu0 %v623, 32
    %v639 = vpop.permute.xlu0 %638
    %648 = vst.msk [vmem:[#allocation8 + $0x2] sm:$0x1] %vm268, %v625
    %649 = vst.msk [vmem:[#allocation8 + $0xa] sm:$0x1] %vm268, %v627
    %650 = vst.msk [vmem:[#allocation8 + $0x12] sm:$0x1] %vm268, %v629
    %651 = vst.msk [vmem:[#allocation8 + $0x1a] sm:$0x1] %vm268, %v631
    %652 = vst.msk [vmem:[#allocation8 + $0x22] sm:$0x1] %vm268, %v633
    %653 = vst.msk [vmem:[#allocation8 + $0x2a] sm:$0x1] %vm268, %v635
    %654 = vst.msk [vmem:[#allocation8 + $0x32] sm:$0x1] %vm268, %v637
    %655 = vst.msk [vmem:[#allocation8 + $0x3a] sm:$0x1] %vm268, %v639
    %vm656 = vcmp.gt.s32.totalorder %v72, 3
    %s657 = scalar_lea.vmem [#allocation2], 24
    %v658 = vld [vmem:[%s657] sm:$0xff]
    %v659 = vsel %vm91, %v538, 0
    %661 = vmatpush.msra.mxu0 0.0
    %662 = vmatpush.msra.mxu0 0.0
    %663 = vmatpush.msra.mxu0 0.0
    %664 = vmatpush.msra.mxu0 0.0
    %665 = vmatpush.msra.mxu0 0.0
    %666 = vmatpush.msra.mxu0 0.0
    %667 = vmatpush.msra.mxu0 0.0
    %668 = vmatpush.msra.mxu0 0.0
    %669 = vmatpush.msra.mxu0 0.0
    %670 = vmatpush.msra.mxu0 0.0
    %671 = vmatpush.msra.mxu0 0.0
    %672 = vmatpush.msra.mxu0 0.0
    %673 = vmatpush.msra.mxu0 %v76
    %674 = vmatpush.msra.mxu0 %v75
    %675 = vmatpush.msra.mxu0 %v74
    %676 = vmatpush.msra.mxu0 %v73
    %677 = vmatmul.f32.gmra.mxu0 %v659
    %v678 = vpop.f32.mrf.mxu0
    %v679 = vadd.f32 0.0, %v678
    %680 = vdwg.mxu0
    %v681 = vadd.f32 %v658, %v679
    %v682 = vxor.u32 %v681, 2147483648
    %v683 = vmul.f32 %v682, 1.442695
    %v684 = vpow.pop %v683
    %v685 = vadd.f32 %v684, 1.0
    %v686 = vrcp.pop %v685
    %v687 = vmul.f32 %v685, %v686
    %v688 = vsub.f32 1.0, %v687
    %v689 = vmul.f32 %v686, %v688
    %v690 = vadd.f32 %v686, %v689
    %vm691 = vweird.f32 %v685
    %vm692 = vweird.f32 %v686
    %vm693 = vmor %vm691, %vm692
    %v694 = vsel %vm693, %v686, %v690
    %v695 = vand.u32 2147483647, %v685
    %vm696 = vcmp.eq.f32.partialorder %v695, 8.507059e+37
    %v697 = vand.u32 %v685, 2147483648
    %v698 = vor.u32 1.1754944e-38, %v697
    %v699 = vsel %vm696, %v698, %v694
    %v700 = vmul.f32 1.0, %v699
    %v701 = vtanh.pop %v681
    %v702 = vmul.f32 %v700, %v535
    %704 = vrot.lane.b32.xlu0 %v701, 64
    %v705 = vpop.permute.xlu0 %704
    %v707 = vmul.f32 %v700, %v705
    %709 = vrot.lane.b32.xlu0 %v707, 32
    %v710 = vpop.permute.xlu0 %709
    %v712 = vadd.f32 %v702, %v710
    %v713 = vtanh.pop %v712
    %715 = vrot.lane.b32.xlu0 %v713, 64
    %v716 = vpop.permute.xlu0 %715
    %v718 = vmul.f32 %v700, %v716
    %v719 = vsel %vm656, 1, 0
    %720 = vset.pattern.permute.xlu0 0
    %721 = vperm.xlu0 %720, %v719
    %v722 = vpop.permute.xlu0 %721
    %vm723 = vcmp.eq.s32.totalorder %v722, 1
    %v724 = vsel %vm723, %v718, %v534
    %v725 = vsel %vm723, %v712, %v535
    %727 = vrot.lane.b32.xlu0 %v724, 32
    %v728 = vpop.permute.xlu0 %727
    %731 = vrot.lane.b32.xlu0 %v605, 64
    %v732 = vpop.permute.xlu0 %731
    %v734 = vsel %vm91, %v728, %v732
    %v736 = vsel %vm165, %v734, 0
    %738 = vmatpush.msra.mxu0 0.0
    %739 = vmatpush.msra.mxu0 0.0
    %740 = vmatpush.msra.mxu0 0.0
    %741 = vmatpush.msra.mxu0 0.0
    %742 = vmatpush.msra.mxu0 0.0
    %743 = vmatpush.msra.mxu0 0.0
    %744 = vmatpush.msra.mxu0 0.0
    %745 = vmatpush.msra.mxu0 0.0
    %746 = vmatpush.msra.mxu0 %v84
    %747 = vmatpush.msra.mxu0 %v83
    %748 = vmatpush.msra.mxu0 %v82
    %749 = vmatpush.msra.mxu0 %v81
    %750 = vmatpush.msra.mxu0 %v80
    %751 = vmatpush.msra.mxu0 %v79
    %752 = vmatpush.msra.mxu0 %v78
    %753 = vmatpush.msra.mxu0 %v77
    %754 = vmatmul.f32.gmra.mxu0 %v736
    %v755 = vpop.f32.mrf.mxu0
    %v756 = vadd.f32 %v87, %v755
    %757 = vdwg.mxu0
    %v758 = vxor.u32 %v756, 2147483648
    %v759 = vmul.f32 %v758, 1.442695
    %v760 = vpow.pop %v759
    %v761 = vadd.f32 %v760, 1.0
    %v762 = vrcp.pop %v761
    %v763 = vmul.f32 %v761, %v762
    %v764 = vsub.f32 1.0, %v763
    %v765 = vmul.f32 %v762, %v764
    %v766 = vadd.f32 %v762, %v765
    %vm767 = vweird.f32 %v761
    %vm768 = vweird.f32 %v762
    %vm769 = vmor %vm767, %vm768
    %v770 = vsel %vm769, %v762, %v766
    %v771 = vand.u32 2147483647, %v761
    %vm772 = vcmp.eq.f32.partialorder %v771, 8.507059e+37
    %v773 = vand.u32 %v761, 2147483648
    %v774 = vor.u32 1.1754944e-38, %v773
    %v775 = vsel %vm772, %v774, %v770
    %v776 = vmul.f32 1.0, %v775
    %v777 = vtanh.pop %v756
    %v778 = vmul.f32 %v776, %v606
    %780 = vrot.lane.b32.xlu0 %v777, 64
    %v781 = vpop.permute.xlu0 %780
    %v783 = vmul.f32 %v776, %v781
    %785 = vrot.lane.b32.xlu0 %v783, 32
    %v786 = vpop.permute.xlu0 %785
    %v788 = vadd.f32 %v778, %v786
    %v789 = vtanh.pop %v788
    %791 = vrot.lane.b32.xlu0 %v789, 64
    %v792 = vpop.permute.xlu0 %791
    %v794 = vmul.f32 %v776, %v792
    %v795 = vsel %vm723, %v794, %v605
    %v796 = vsel %vm723, %v788, %v606
    %v797 = vsel %vm723, %v794, 0.0
    %v799 = vrot.slane %v797, 1
    %v800 = vrot.slane %v797, 2
    %v801 = vrot.slane %v797, 3
    %v802 = vrot.slane %v797, 4
    %v803 = vrot.slane %v797, 5
    %v804 = vrot.slane %v797, 6
    %v805 = vrot.slane %v797, 7
    %v806 = vperm.slane %v797, 0
    %v807 = vperm.slane %v799, 0
    %v808 = vperm.slane %v800, 0
    %v809 = vperm.slane %v801, 0
    %v810 = vperm.slane %v802, 0
    %v811 = vperm.slane %v803, 0
    %v812 = vperm.slane %v804, 0
    %v813 = vperm.slane %v805, 0
    %814 = vrot.lane.b32.xlu0 %v806, 32
    %v815 = vpop.permute.xlu0 %814
    %816 = vrot.lane.b32.xlu0 %v807, 32
    %v817 = vpop.permute.xlu0 %816
    %818 = vrot.lane.b32.xlu0 %v808, 32
    %v819 = vpop.permute.xlu0 %818
    %820 = vrot.lane.b32.xlu0 %v809, 32
    %v821 = vpop.permute.xlu0 %820
    %822 = vrot.lane.b32.xlu0 %v810, 32
    %v823 = vpop.permute.xlu0 %822
    %824 = vrot.lane.b32.xlu0 %v811, 32
    %v825 = vpop.permute.xlu0 %824
    %826 = vrot.lane.b32.xlu0 %v812, 32
    %v827 = vpop.permute.xlu0 %826
    %828 = vrot.lane.b32.xlu0 %v813, 32
    %v829 = vpop.permute.xlu0 %828
    %838 = vst.msk [vmem:[#allocation8 + $0x3] sm:$0x1] %vm268, %v815
    %839 = vst.msk [vmem:[#allocation8 + $0xb] sm:$0x1] %vm268, %v817
    %840 = vst.msk [vmem:[#allocation8 + $0x13] sm:$0x1] %vm268, %v819
    %841 = vst.msk [vmem:[#allocation8 + $0x1b] sm:$0x1] %vm268, %v821
    %842 = vst.msk [vmem:[#allocation8 + $0x23] sm:$0x1] %vm268, %v823
    %843 = vst.msk [vmem:[#allocation8 + $0x2b] sm:$0x1] %vm268, %v825
    %844 = vst.msk [vmem:[#allocation8 + $0x33] sm:$0x1] %vm268, %v827
    %845 = vst.msk [vmem:[#allocation8 + $0x3b] sm:$0x1] %vm268, %v829
    %vm846 = vcmp.gt.s32.totalorder %v72, 4
    %s847 = scalar_lea.vmem [#allocation2], 32
    %v848 = vld [vmem:[%s847] sm:$0xff]
    %v849 = vsel %vm91, %v728, 0
    %851 = vmatpush.msra.mxu0 0.0
    %852 = vmatpush.msra.mxu0 0.0
    %853 = vmatpush.msra.mxu0 0.0
    %854 = vmatpush.msra.mxu0 0.0
    %855 = vmatpush.msra.mxu0 0.0
    %856 = vmatpush.msra.mxu0 0.0
    %857 = vmatpush.msra.mxu0 0.0
    %858 = vmatpush.msra.mxu0 0.0
    %859 = vmatpush.msra.mxu0 0.0
    %860 = vmatpush.msra.mxu0 0.0
    %861 = vmatpush.msra.mxu0 0.0
    %862 = vmatpush.msra.mxu0 0.0
    %863 = vmatpush.msra.mxu0 %v76
    %864 = vmatpush.msra.mxu0 %v75
    %865 = vmatpush.msra.mxu0 %v74
    %866 = vmatpush.msra.mxu0 %v73
    %867 = vmatmul.f32.gmra.mxu0 %v849
    %v868 = vpop.f32.mrf.mxu0
    %v869 = vadd.f32 0.0, %v868
    %870 = vdwg.mxu0
    %v871 = vadd.f32 %v848, %v869
    %v872 = vxor.u32 %v871, 2147483648
    %v873 = vmul.f32 %v872, 1.442695
    %v874 = vpow.pop %v873
    %v875 = vadd.f32 %v874, 1.0
    %v876 = vrcp.pop %v875
    %v877 = vmul.f32 %v875, %v876
    %v878 = vsub.f32 1.0, %v877
    %v879 = vmul.f32 %v876, %v878
    %v880 = vadd.f32 %v876, %v879
    %vm881 = vweird.f32 %v875
    %vm882 = vweird.f32 %v876
    %vm883 = vmor %vm881, %vm882
    %v884 = vsel %vm883, %v876, %v880
    %v885 = vand.u32 2147483647, %v875
    %vm886 = vcmp.eq.f32.partialorder %v885, 8.507059e+37
    %v887 = vand.u32 %v875, 2147483648
    %v888 = vor.u32 1.1754944e-38, %v887
    %v889 = vsel %vm886, %v888, %v884
    %v890 = vmul.f32 1.0, %v889
    %v891 = vtanh.pop %v871
    %v892 = vmul.f32 %v890, %v725
    %894 = vrot.lane.b32.xlu0 %v891, 64
    %v895 = vpop.permute.xlu0 %894
    %v897 = vmul.f32 %v890, %v895
    %899 = vrot.lane.b32.xlu0 %v897, 32
    %v900 = vpop.permute.xlu0 %899
    %v902 = vadd.f32 %v892, %v900
    %v903 = vtanh.pop %v902
    %905 = vrot.lane.b32.xlu0 %v903, 64
    %v906 = vpop.permute.xlu0 %905
    %v908 = vmul.f32 %v890, %v906
    %v909 = vsel %vm846, 1, 0
    %910 = vset.pattern.permute.xlu0 0
    %911 = vperm.xlu0 %910, %v909
    %v912 = vpop.permute.xlu0 %911
    %vm913 = vcmp.eq.s32.totalorder %v912, 1
    %v914 = vsel %vm913, %v908, %v724
    %v915 = vsel %vm913, %v902, %v725
    %917 = vrot.lane.b32.xlu0 %v914, 32
    %v918 = vpop.permute.xlu0 %917
    %921 = vrot.lane.b32.xlu0 %v795, 64
    %v922 = vpop.permute.xlu0 %921
    %v924 = vsel %vm91, %v918, %v922
    %v926 = vsel %vm165, %v924, 0
    %928 = vmatpush.msra.mxu0 0.0
    %929 = vmatpush.msra.mxu0 0.0
    %930 = vmatpush.msra.mxu0 0.0
    %931 = vmatpush.msra.mxu0 0.0
    %932 = vmatpush.msra.mxu0 0.0
    %933 = vmatpush.msra.mxu0 0.0
    %934 = vmatpush.msra.mxu0 0.0
    %935 = vmatpush.msra.mxu0 0.0
    %936 = vmatpush.msra.mxu0 %v84
    %937 = vmatpush.msra.mxu0 %v83
    %938 = vmatpush.msra.mxu0 %v82
    %939 = vmatpush.msra.mxu0 %v81
    %940 = vmatpush.msra.mxu0 %v80
    %941 = vmatpush.msra.mxu0 %v79
    %942 = vmatpush.msra.mxu0 %v78
    %943 = vmatpush.msra.mxu0 %v77
    %944 = vmatmul.f32.gmra.mxu0 %v926
    %v945 = vpop.f32.mrf.mxu0
    %v946 = vadd.f32 %v87, %v945
    %947 = vdwg.mxu0
    %v948 = vxor.u32 %v946, 2147483648
    %v949 = vmul.f32 %v948, 1.442695
    %v950 = vpow.pop %v949
    %v951 = vadd.f32 %v950, 1.0
    %v952 = vrcp.pop %v951
    %v953 = vmul.f32 %v951, %v952
    %v954 = vsub.f32 1.0, %v953
    %v955 = vmul.f32 %v952, %v954
    %v956 = vadd.f32 %v952, %v955
    %vm957 = vweird.f32 %v951
    %vm958 = vweird.f32 %v952
    %vm959 = vmor %vm957, %vm958
    %v960 = vsel %vm959, %v952, %v956
    %v961 = vand.u32 2147483647, %v951
    %vm962 = vcmp.eq.f32.partialorder %v961, 8.507059e+37
    %v963 = vand.u32 %v951, 2147483648
    %v964 = vor.u32 1.1754944e-38, %v963
    %v965 = vsel %vm962, %v964, %v960
    %v966 = vmul.f32 1.0, %v965
    %v967 = vtanh.pop %v946
    %v968 = vmul.f32 %v966, %v796
    %970 = vrot.lane.b32.xlu0 %v967, 64
    %v971 = vpop.permute.xlu0 %970
    %v973 = vmul.f32 %v966, %v971
    %975 = vrot.lane.b32.xlu0 %v973, 32
    %v976 = vpop.permute.xlu0 %975
    %v978 = vadd.f32 %v968, %v976
    %v979 = vtanh.pop %v978
    %981 = vrot.lane.b32.xlu0 %v979, 64
    %v982 = vpop.permute.xlu0 %981
    %v984 = vmul.f32 %v966, %v982
    %v985 = vsel %vm913, %v984, %v795
    %v986 = vsel %vm913, %v978, %v796
    %v987 = vsel %vm913, %v984, 0.0
    %v989 = vrot.slane %v987, 1
    %v990 = vrot.slane %v987, 2
    %v991 = vrot.slane %v987, 3
    %v992 = vrot.slane %v987, 4
    %v993 = vrot.slane %v987, 5
    %v994 = vrot.slane %v987, 6
    %v995 = vrot.slane %v987, 7
    %v996 = vperm.slane %v987, 0
    %v997 = vperm.slane %v989, 0
    %v998 = vperm.slane %v990, 0
    %v999 = vperm.slane %v991, 0
    %v1000 = vperm.slane %v992, 0
    %v1001 = vperm.slane %v993, 0
    %v1002 = vperm.slane %v994, 0
    %v1003 = vperm.slane %v995, 0
    %1004 = vrot.lane.b32.xlu0 %v996, 32
    %v1005 = vpop.permute.xlu0 %1004
    %1006 = vrot.lane.b32.xlu0 %v997, 32
    %v1007 = vpop.permute.xlu0 %1006
    %1008 = vrot.lane.b32.xlu0 %v998, 32
    %v1009 = vpop.permute.xlu0 %1008
    %1010 = vrot.lane.b32.xlu0 %v999, 32
    %v1011 = vpop.permute.xlu0 %1010
    %1012 = vrot.lane.b32.xlu0 %v1000, 32
    %v1013 = vpop.permute.xlu0 %1012
    %1014 = vrot.lane.b32.xlu0 %v1001, 32
    %v1015 = vpop.permute.xlu0 %1014
    %1016 = vrot.lane.b32.xlu0 %v1002, 32
    %v1017 = vpop.permute.xlu0 %1016
    %1018 = vrot.lane.b32.xlu0 %v1003, 32
    %v1019 = vpop.permute.xlu0 %1018
    %1028 = vst.msk [vmem:[#allocation8 + $0x4] sm:$0x1] %vm268, %v1005
    %1029 = vst.msk [vmem:[#allocation8 + $0xc] sm:$0x1] %vm268, %v1007
    %1030 = vst.msk [vmem:[#allocation8 + $0x14] sm:$0x1] %vm268, %v1009
    %1031 = vst.msk [vmem:[#allocation8 + $0x1c] sm:$0x1] %vm268, %v1011
    %1032 = vst.msk [vmem:[#allocation8 + $0x24] sm:$0x1] %vm268, %v1013
    %1033 = vst.msk [vmem:[#allocation8 + $0x2c] sm:$0x1] %vm268, %v1015
    %1034 = vst.msk [vmem:[#allocation8 + $0x34] sm:$0x1] %vm268, %v1017
    %1035 = vst.msk [vmem:[#allocation8 + $0x3c] sm:$0x1] %vm268, %v1019
    %vm1036 = vcmp.gt.s32.totalorder %v72, 5
    %s1037 = scalar_lea.vmem [#allocation2], 40
    %v1038 = vld [vmem:[%s1037] sm:$0xff]
    %v1039 = vsel %vm91, %v918, 0
    %1041 = vmatpush.msra.mxu0 0.0
    %1042 = vmatpush.msra.mxu0 0.0
    %1043 = vmatpush.msra.mxu0 0.0
    %1044 = vmatpush.msra.mxu0 0.0
    %1045 = vmatpush.msra.mxu0 0.0
    %1046 = vmatpush.msra.mxu0 0.0
    %1047 = vmatpush.msra.mxu0 0.0
    %1048 = vmatpush.msra.mxu0 0.0
    %1049 = vmatpush.msra.mxu0 0.0
    %1050 = vmatpush.msra.mxu0 0.0
    %1051 = vmatpush.msra.mxu0 0.0
    %1052 = vmatpush.msra.mxu0 0.0
    %1053 = vmatpush.msra.mxu0 %v76
    %1054 = vmatpush.msra.mxu0 %v75
    %1055 = vmatpush.msra.mxu0 %v74
    %1056 = vmatpush.msra.mxu0 %v73
    %1057 = vmatmul.f32.gmra.mxu0 %v1039
    %v1058 = vpop.f32.mrf.mxu0
    %v1059 = vadd.f32 0.0, %v1058
    %1060 = vdwg.mxu0
    %v1061 = vadd.f32 %v1038, %v1059
    %v1062 = vxor.u32 %v1061, 2147483648
    %v1063 = vmul.f32 %v1062, 1.442695
    %v1064 = vpow.pop %v1063
    %v1065 = vadd.f32 %v1064, 1.0
    %v1066 = vrcp.pop %v1065
    %v1067 = vmul.f32 %v1065, %v1066
    %v1068 = vsub.f32 1.0, %v1067
    %v1069 = vmul.f32 %v1066, %v1068
    %v1070 = vadd.f32 %v1066, %v1069
    %vm1071 = vweird.f32 %v1065
    %vm1072 = vweird.f32 %v1066
    %vm1073 = vmor %vm1071, %vm1072
    %v1074 = vsel %vm1073, %v1066, %v1070
    %v1075 = vand.u32 2147483647, %v1065
    %vm1076 = vcmp.eq.f32.partialorder %v1075, 8.507059e+37
    %v1077 = vand.u32 %v1065, 2147483648
    %v1078 = vor.u32 1.1754944e-38, %v1077
    %v1079 = vsel %vm1076, %v1078, %v1074
    %v1080 = vmul.f32 1.0, %v1079
    %v1081 = vtanh.pop %v1061
    %v1082 = vmul.f32 %v1080, %v915
    %1084 = vrot.lane.b32.xlu0 %v1081, 64
    %v1085 = vpop.permute.xlu0 %1084
    %v1087 = vmul.f32 %v1080, %v1085
    %1089 = vrot.lane.b32.xlu0 %v1087, 32
    %v1090 = vpop.permute.xlu0 %1089
    %v1092 = vadd.f32 %v1082, %v1090
    %v1093 = vtanh.pop %v1092
    %1095 = vrot.lane.b32.xlu0 %v1093, 64
    %v1096 = vpop.permute.xlu0 %1095
    %v1098 = vmul.f32 %v1080, %v1096
    %v1099 = vsel %vm1036, 1, 0
    %1100 = vset.pattern.permute.xlu0 0
    %1101 = vperm.xlu0 %1100, %v1099
    %v1102 = vpop.permute.xlu0 %1101
    %vm1103 = vcmp.eq.s32.totalorder %v1102, 1
    %v1104 = vsel %vm1103, %v1098, %v914
    %v1105 = vsel %vm1103, %v1092, %v915
    %1107 = vrot.lane.b32.xlu0 %v1104, 32
    %v1108 = vpop.permute.xlu0 %1107
    %1111 = vrot.lane.b32.xlu0 %v985, 64
    %v1112 = vpop.permute.xlu0 %1111
    %v1114 = vsel %vm91, %v1108, %v1112
    %v1116 = vsel %vm165, %v1114, 0
    %1118 = vmatpush.msra.mxu0 0.0
    %1119 = vmatpush.msra.mxu0 0.0
    %1120 = vmatpush.msra.mxu0 0.0
    %1121 = vmatpush.msra.mxu0 0.0
    %1122 = vmatpush.msra.mxu0 0.0
    %1123 = vmatpush.msra.mxu0 0.0
    %1124 = vmatpush.msra.mxu0 0.0
    %1125 = vmatpush.msra.mxu0 0.0
    %1126 = vmatpush.msra.mxu0 %v84
    %1127 = vmatpush.msra.mxu0 %v83
    %1128 = vmatpush.msra.mxu0 %v82
    %1129 = vmatpush.msra.mxu0 %v81
    %1130 = vmatpush.msra.mxu0 %v80
    %1131 = vmatpush.msra.mxu0 %v79
    %1132 = vmatpush.msra.mxu0 %v78
    %1133 = vmatpush.msra.mxu0 %v77
    %1134 = vmatmul.f32.gmra.mxu0 %v1116
    %v1135 = vpop.f32.mrf.mxu0
    %v1136 = vadd.f32 %v87, %v1135
    %1137 = vdwg.mxu0
    %v1138 = vxor.u32 %v1136, 2147483648
    %v1139 = vmul.f32 %v1138, 1.442695
    %v1140 = vpow.pop %v1139
    %v1141 = vadd.f32 %v1140, 1.0
    %v1142 = vrcp.pop %v1141
    %v1143 = vmul.f32 %v1141, %v1142
    %v1144 = vsub.f32 1.0, %v1143
    %v1145 = vmul.f32 %v1142, %v1144
    %v1146 = vadd.f32 %v1142, %v1145
    %vm1147 = vweird.f32 %v1141
    %vm1148 = vweird.f32 %v1142
    %vm1149 = vmor %vm1147, %vm1148
    %v1150 = vsel %vm1149, %v1142, %v1146
    %v1151 = vand.u32 2147483647, %v1141
    %vm1152 = vcmp.eq.f32.partialorder %v1151, 8.507059e+37
    %v1153 = vand.u32 %v1141, 2147483648
    %v1154 = vor.u32 1.1754944e-38, %v1153
    %v1155 = vsel %vm1152, %v1154, %v1150
    %v1156 = vmul.f32 1.0, %v1155
    %v1157 = vtanh.pop %v1136
    %v1158 = vmul.f32 %v1156, %v986
    %1160 = vrot.lane.b32.xlu0 %v1157, 64
    %v1161 = vpop.permute.xlu0 %1160
    %v1163 = vmul.f32 %v1156, %v1161
    %1165 = vrot.lane.b32.xlu0 %v1163, 32
    %v1166 = vpop.permute.xlu0 %1165
    %v1168 = vadd.f32 %v1158, %v1166
    %v1169 = vtanh.pop %v1168
    %1171 = vrot.lane.b32.xlu0 %v1169, 64
    %v1172 = vpop.permute.xlu0 %1171
    %v1174 = vmul.f32 %v1156, %v1172
    %v1175 = vsel %vm1103, %v1174, %v985
    %v1176 = vsel %vm1103, %v1168, %v986
    %v1177 = vsel %vm1103, %v1174, 0.0
    %v1179 = vrot.slane %v1177, 1
    %v1180 = vrot.slane %v1177, 2
    %v1181 = vrot.slane %v1177, 3
    %v1182 = vrot.slane %v1177, 4
    %v1183 = vrot.slane %v1177, 5
    %v1184 = vrot.slane %v1177, 6
    %v1185 = vrot.slane %v1177, 7
    %v1186 = vperm.slane %v1177, 0
    %v1187 = vperm.slane %v1179, 0
    %v1188 = vperm.slane %v1180, 0
    %v1189 = vperm.slane %v1181, 0
    %v1190 = vperm.slane %v1182, 0
    %v1191 = vperm.slane %v1183, 0
    %v1192 = vperm.slane %v1184, 0
    %v1193 = vperm.slane %v1185, 0
    %1194 = vrot.lane.b32.xlu0 %v1186, 32
    %v1195 = vpop.permute.xlu0 %1194
    %1196 = vrot.lane.b32.xlu0 %v1187, 32
    %v1197 = vpop.permute.xlu0 %1196
    %1198 = vrot.lane.b32.xlu0 %v1188, 32
    %v1199 = vpop.permute.xlu0 %1198
    %1200 = vrot.lane.b32.xlu0 %v1189, 32
    %v1201 = vpop.permute.xlu0 %1200
    %1202 = vrot.lane.b32.xlu0 %v1190, 32
    %v1203 = vpop.permute.xlu0 %1202
    %1204 = vrot.lane.b32.xlu0 %v1191, 32
    %v1205 = vpop.permute.xlu0 %1204
    %1206 = vrot.lane.b32.xlu0 %v1192, 32
    %v1207 = vpop.permute.xlu0 %1206
    %1208 = vrot.lane.b32.xlu0 %v1193, 32
    %v1209 = vpop.permute.xlu0 %1208
    %1218 = vst.msk [vmem:[#allocation8 + $0x5] sm:$0x1] %vm268, %v1195
    %1219 = vst.msk [vmem:[#allocation8 + $0xd] sm:$0x1] %vm268, %v1197
    %1220 = vst.msk [vmem:[#allocation8 + $0x15] sm:$0x1] %vm268, %v1199
    %1221 = vst.msk [vmem:[#allocation8 + $0x1d] sm:$0x1] %vm268, %v1201
    %1222 = vst.msk [vmem:[#allocation8 + $0x25] sm:$0x1] %vm268, %v1203
    %1223 = vst.msk [vmem:[#allocation8 + $0x2d] sm:$0x1] %vm268, %v1205
    %1224 = vst.msk [vmem:[#allocation8 + $0x35] sm:$0x1] %vm268, %v1207
    %1225 = vst.msk [vmem:[#allocation8 + $0x3d] sm:$0x1] %vm268, %v1209
    %vm1226 = vcmp.gt.s32.totalorder %v72, 6
    %s1227 = scalar_lea.vmem [#allocation2], 48
    %v1228 = vld [vmem:[%s1227] sm:$0xff]
    %v1229 = vsel %vm91, %v1108, 0
    %1231 = vmatpush.msra.mxu0 0.0
    %1232 = vmatpush.msra.mxu0 0.0
    %1233 = vmatpush.msra.mxu0 0.0
    %1234 = vmatpush.msra.mxu0 0.0
    %1235 = vmatpush.msra.mxu0 0.0
    %1236 = vmatpush.msra.mxu0 0.0
    %1237 = vmatpush.msra.mxu0 0.0
    %1238 = vmatpush.msra.mxu0 0.0
    %1239 = vmatpush.msra.mxu0 0.0
    %1240 = vmatpush.msra.mxu0 0.0
    %1241 = vmatpush.msra.mxu0 0.0
    %1242 = vmatpush.msra.mxu0 0.0
    %1243 = vmatpush.msra.mxu0 %v76
    %1244 = vmatpush.msra.mxu0 %v75
    %1245 = vmatpush.msra.mxu0 %v74
    %1246 = vmatpush.msra.mxu0 %v73
    %1247 = vmatmul.f32.gmra.mxu0 %v1229
    %v1248 = vpop.f32.mrf.mxu0
    %v1249 = vadd.f32 0.0, %v1248
    %1250 = vdwg.mxu0
    %v1251 = vadd.f32 %v1228, %v1249
    %v1252 = vxor.u32 %v1251, 2147483648
    %v1253 = vmul.f32 %v1252, 1.442695
    %v1254 = vpow.pop %v1253
    %v1255 = vadd.f32 %v1254, 1.0
    %v1256 = vrcp.pop %v1255
    %v1257 = vmul.f32 %v1255, %v1256
    %v1258 = vsub.f32 1.0, %v1257
    %v1259 = vmul.f32 %v1256, %v1258
    %v1260 = vadd.f32 %v1256, %v1259
    %vm1261 = vweird.f32 %v1255
    %vm1262 = vweird.f32 %v1256
    %vm1263 = vmor %vm1261, %vm1262
    %v1264 = vsel %vm1263, %v1256, %v1260
    %v1265 = vand.u32 2147483647, %v1255
    %vm1266 = vcmp.eq.f32.partialorder %v1265, 8.507059e+37
    %v1267 = vand.u32 %v1255, 2147483648
    %v1268 = vor.u32 1.1754944e-38, %v1267
    %v1269 = vsel %vm1266, %v1268, %v1264
    %v1270 = vmul.f32 1.0, %v1269
    %v1271 = vtanh.pop %v1251
    %v1272 = vmul.f32 %v1270, %v1105
    %1274 = vrot.lane.b32.xlu0 %v1271, 64
    %v1275 = vpop.permute.xlu0 %1274
    %v1277 = vmul.f32 %v1270, %v1275
    %1279 = vrot.lane.b32.xlu0 %v1277, 32
    %v1280 = vpop.permute.xlu0 %1279
    %v1282 = vadd.f32 %v1272, %v1280
    %v1283 = vtanh.pop %v1282
    %1285 = vrot.lane.b32.xlu0 %v1283, 64
    %v1286 = vpop.permute.xlu0 %1285
    %v1288 = vmul.f32 %v1270, %v1286
    %v1289 = vsel %vm1226, 1, 0
    %1290 = vset.pattern.permute.xlu0 0
    %1291 = vperm.xlu0 %1290, %v1289
    %v1292 = vpop.permute.xlu0 %1291
    %vm1293 = vcmp.eq.s32.totalorder %v1292, 1
    %v1294 = vsel %vm1293, %v1288, %v1104
    %v1295 = vsel %vm1293, %v1282, %v1105
    %1297 = vrot.lane.b32.xlu0 %v1294, 32
    %v1298 = vpop.permute.xlu0 %1297
    %1301 = vrot.lane.b32.xlu0 %v1175, 64
    %v1302 = vpop.permute.xlu0 %1301
    %v1304 = vsel %vm91, %v1298, %v1302
    %v1306 = vsel %vm165, %v1304, 0
    %1308 = vmatpush.msra.mxu0 0.0
    %1309 = vmatpush.msra.mxu0 0.0
    %1310 = vmatpush.msra.mxu0 0.0
    %1311 = vmatpush.msra.mxu0 0.0
    %1312 = vmatpush.msra.mxu0 0.0
    %1313 = vmatpush.msra.mxu0 0.0
    %1314 = vmatpush.msra.mxu0 0.0
    %1315 = vmatpush.msra.mxu0 0.0
    %1316 = vmatpush.msra.mxu0 %v84
    %1317 = vmatpush.msra.mxu0 %v83
    %1318 = vmatpush.msra.mxu0 %v82
    %1319 = vmatpush.msra.mxu0 %v81
    %1320 = vmatpush.msra.mxu0 %v80
    %1321 = vmatpush.msra.mxu0 %v79
    %1322 = vmatpush.msra.mxu0 %v78
    %1323 = vmatpush.msra.mxu0 %v77
    %1324 = vmatmul.f32.gmra.mxu0 %v1306
    %v1325 = vpop.f32.mrf.mxu0
    %v1326 = vadd.f32 %v87, %v1325
    %1327 = vdwg.mxu0
    %v1328 = vxor.u32 %v1326, 2147483648
    %v1329 = vmul.f32 %v1328, 1.442695
    %v1330 = vpow.pop %v1329
    %v1331 = vadd.f32 %v1330, 1.0
    %v1332 = vrcp.pop %v1331
    %v1333 = vmul.f32 %v1331, %v1332
    %v1334 = vsub.f32 1.0, %v1333
    %v1335 = vmul.f32 %v1332, %v1334
    %v1336 = vadd.f32 %v1332, %v1335
    %vm1337 = vweird.f32 %v1331
    %vm1338 = vweird.f32 %v1332
    %vm1339 = vmor %vm1337, %vm1338
    %v1340 = vsel %vm1339, %v1332, %v1336
    %v1341 = vand.u32 2147483647, %v1331
    %vm1342 = vcmp.eq.f32.partialorder %v1341, 8.507059e+37
    %v1343 = vand.u32 %v1331, 2147483648
    %v1344 = vor.u32 1.1754944e-38, %v1343
    %v1345 = vsel %vm1342, %v1344, %v1340
    %v1346 = vmul.f32 1.0, %v1345
    %v1347 = vtanh.pop %v1326
    %v1348 = vmul.f32 %v1346, %v1176
    %1350 = vrot.lane.b32.xlu0 %v1347, 64
    %v1351 = vpop.permute.xlu0 %1350
    %v1353 = vmul.f32 %v1346, %v1351
    %1355 = vrot.lane.b32.xlu0 %v1353, 32
    %v1356 = vpop.permute.xlu0 %1355
    %v1358 = vadd.f32 %v1348, %v1356
    %v1359 = vtanh.pop %v1358
    %1361 = vrot.lane.b32.xlu0 %v1359, 64
    %v1362 = vpop.permute.xlu0 %1361
    %v1364 = vmul.f32 %v1346, %v1362
    %v1365 = vsel %vm1293, %v1364, %v1175
    %v1366 = vsel %vm1293, %v1358, %v1176
    %v1367 = vsel %vm1293, %v1364, 0.0
    %v1369 = vrot.slane %v1367, 1
    %v1370 = vrot.slane %v1367, 2
    %v1371 = vrot.slane %v1367, 3
    %v1372 = vrot.slane %v1367, 4
    %v1373 = vrot.slane %v1367, 5
    %v1374 = vrot.slane %v1367, 6
    %v1375 = vrot.slane %v1367, 7
    %v1376 = vperm.slane %v1367, 0
    %v1377 = vperm.slane %v1369, 0
    %v1378 = vperm.slane %v1370, 0
    %v1379 = vperm.slane %v1371, 0
    %v1380 = vperm.slane %v1372, 0
    %v1381 = vperm.slane %v1373, 0
    %v1382 = vperm.slane %v1374, 0
    %v1383 = vperm.slane %v1375, 0
    %1384 = vrot.lane.b32.xlu0 %v1376, 32
    %v1385 = vpop.permute.xlu0 %1384
    %1386 = vrot.lane.b32.xlu0 %v1377, 32
    %v1387 = vpop.permute.xlu0 %1386
    %1388 = vrot.lane.b32.xlu0 %v1378, 32
    %v1389 = vpop.permute.xlu0 %1388
    %1390 = vrot.lane.b32.xlu0 %v1379, 32
    %v1391 = vpop.permute.xlu0 %1390
    %1392 = vrot.lane.b32.xlu0 %v1380, 32
    %v1393 = vpop.permute.xlu0 %1392
    %1394 = vrot.lane.b32.xlu0 %v1381, 32
    %v1395 = vpop.permute.xlu0 %1394
    %1396 = vrot.lane.b32.xlu0 %v1382, 32
    %v1397 = vpop.permute.xlu0 %1396
    %1398 = vrot.lane.b32.xlu0 %v1383, 32
    %v1399 = vpop.permute.xlu0 %1398
    %1408 = vst.msk [vmem:[#allocation8 + $0x6] sm:$0x1] %vm268, %v1385
    %1409 = vst.msk [vmem:[#allocation8 + $0xe] sm:$0x1] %vm268, %v1387
    %1410 = vst.msk [vmem:[#allocation8 + $0x16] sm:$0x1] %vm268, %v1389
    %1411 = vst.msk [vmem:[#allocation8 + $0x1e] sm:$0x1] %vm268, %v1391
    %1412 = vst.msk [vmem:[#allocation8 + $0x26] sm:$0x1] %vm268, %v1393
    %1413 = vst.msk [vmem:[#allocation8 + $0x2e] sm:$0x1] %vm268, %v1395
    %1414 = vst.msk [vmem:[#allocation8 + $0x36] sm:$0x1] %vm268, %v1397
    %1415 = vst.msk [vmem:[#allocation8 + $0x3e] sm:$0x1] %vm268, %v1399
    %vm1416 = vcmp.gt.s32.totalorder %v72, 7
    %s1417 = scalar_lea.vmem [#allocation2], 56
    %v1418 = vld [vmem:[%s1417] sm:$0xff]
    %v1419 = vsel %vm91, %v1298, 0
    %1421 = vmatpush.msra.mxu0 0.0
    %1422 = vmatpush.msra.mxu0 0.0
    %1423 = vmatpush.msra.mxu0 0.0
    %1424 = vmatpush.msra.mxu0 0.0
    %1425 = vmatpush.msra.mxu0 0.0
    %1426 = vmatpush.msra.mxu0 0.0
    %1427 = vmatpush.msra.mxu0 0.0
    %1428 = vmatpush.msra.mxu0 0.0
    %1429 = vmatpush.msra.mxu0 0.0
    %1430 = vmatpush.msra.mxu0 0.0
    %1431 = vmatpush.msra.mxu0 0.0
    %1432 = vmatpush.msra.mxu0 0.0
    %1433 = vmatpush.msra.mxu0 %v76
    %1434 = vmatpush.msra.mxu0 %v75
    %1435 = vmatpush.msra.mxu0 %v74
    %1436 = vmatpush.msra.mxu0 %v73
    %1437 = vmatmul.f32.gmra.mxu0 %v1419
    %v1438 = vpop.f32.mrf.mxu0
    %v1439 = vadd.f32 0.0, %v1438
    %1440 = vdwg.mxu0
    %v1441 = vadd.f32 %v1418, %v1439
    %v1442 = vxor.u32 %v1441, 2147483648
    %v1443 = vmul.f32 %v1442, 1.442695
    %v1444 = vpow.pop %v1443
    %v1445 = vadd.f32 %v1444, 1.0
    %v1446 = vrcp.pop %v1445
    %v1447 = vmul.f32 %v1445, %v1446
    %v1448 = vsub.f32 1.0, %v1447
    %v1449 = vmul.f32 %v1446, %v1448
    %v1450 = vadd.f32 %v1446, %v1449
    %vm1451 = vweird.f32 %v1445
    %vm1452 = vweird.f32 %v1446
    %vm1453 = vmor %vm1451, %vm1452
    %v1454 = vsel %vm1453, %v1446, %v1450
    %v1455 = vand.u32 2147483647, %v1445
    %vm1456 = vcmp.eq.f32.partialorder %v1455, 8.507059e+37
    %v1457 = vand.u32 %v1445, 2147483648
    %v1458 = vor.u32 1.1754944e-38, %v1457
    %v1459 = vsel %vm1456, %v1458, %v1454
    %v1460 = vmul.f32 1.0, %v1459
    %v1461 = vtanh.pop %v1441
    %v1462 = vmul.f32 %v1460, %v1295
    %1464 = vrot.lane.b32.xlu0 %v1461, 64
    %v1465 = vpop.permute.xlu0 %1464
    %v1467 = vmul.f32 %v1460, %v1465
    %1469 = vrot.lane.b32.xlu0 %v1467, 32
    %v1470 = vpop.permute.xlu0 %1469
    %v1472 = vadd.f32 %v1462, %v1470
    %v1473 = vtanh.pop %v1472
    %1475 = vrot.lane.b32.xlu0 %v1473, 64
    %v1476 = vpop.permute.xlu0 %1475
    %v1478 = vmul.f32 %v1460, %v1476
    %v1479 = vsel %vm1416, 1, 0
    %1480 = vset.pattern.permute.xlu0 0
    %1481 = vperm.xlu0 %1480, %v1479
    %v1482 = vpop.permute.xlu0 %1481
    %vm1483 = vcmp.eq.s32.totalorder %v1482, 1
    %v1484 = vsel %vm1483, %v1478, %v1294
    %v1485 = vsel %vm1483, %v1472, %v1295
    %1487 = vrot.lane.b32.xlu0 %v1484, 32
    %v1488 = vpop.permute.xlu0 %1487
    %1491 = vrot.lane.b32.xlu0 %v1365, 64
    %v1492 = vpop.permute.xlu0 %1491
    %v1494 = vsel %vm91, %v1488, %v1492
    %v1496 = vsel %vm165, %v1494, 0
    %1498 = vmatpush.msra.mxu0 0.0
    %1499 = vmatpush.msra.mxu0 0.0
    %1500 = vmatpush.msra.mxu0 0.0
    %1501 = vmatpush.msra.mxu0 0.0
    %1502 = vmatpush.msra.mxu0 0.0
    %1503 = vmatpush.msra.mxu0 0.0
    %1504 = vmatpush.msra.mxu0 0.0
    %1505 = vmatpush.msra.mxu0 0.0
    %1506 = vmatpush.msra.mxu0 %v84
    %1507 = vmatpush.msra.mxu0 %v83
    %1508 = vmatpush.msra.mxu0 %v82
    %1509 = vmatpush.msra.mxu0 %v81
    %1510 = vmatpush.msra.mxu0 %v80
    %1511 = vmatpush.msra.mxu0 %v79
    %1512 = vmatpush.msra.mxu0 %v78
    %1513 = vmatpush.msra.mxu0 %v77
    %1514 = vmatmul.f32.gmra.mxu0 %v1496
    %v1515 = vpop.f32.mrf.mxu0
    %v1516 = vadd.f32 %v87, %v1515
    %1517 = vdwg.mxu0
    %v1518 = vxor.u32 %v1516, 2147483648
    %v1519 = vmul.f32 %v1518, 1.442695
    %v1520 = vpow.pop %v1519
    %v1521 = vadd.f32 %v1520, 1.0
    %v1522 = vrcp.pop %v1521
    %v1523 = vmul.f32 %v1521, %v1522
    %v1524 = vsub.f32 1.0, %v1523
    %v1525 = vmul.f32 %v1522, %v1524
    %v1526 = vadd.f32 %v1522, %v1525
    %vm1527 = vweird.f32 %v1521
    %vm1528 = vweird.f32 %v1522
    %vm1529 = vmor %vm1527, %vm1528
    %v1530 = vsel %vm1529, %v1522, %v1526
    %v1531 = vand.u32 2147483647, %v1521
    %vm1532 = vcmp.eq.f32.partialorder %v1531, 8.507059e+37
    %v1533 = vand.u32 %v1521, 2147483648
    %v1534 = vor.u32 1.1754944e-38, %v1533
    %v1535 = vsel %vm1532, %v1534, %v1530
    %v1536 = vmul.f32 1.0, %v1535
    %v1537 = vtanh.pop %v1516
    %v1538 = vmul.f32 %v1536, %v1366
    %1540 = vrot.lane.b32.xlu0 %v1537, 64
    %v1541 = vpop.permute.xlu0 %1540
    %v1543 = vmul.f32 %v1536, %v1541
    %1545 = vrot.lane.b32.xlu0 %v1543, 32
    %v1546 = vpop.permute.xlu0 %1545
    %v1548 = vadd.f32 %v1538, %v1546
    %v1549 = vtanh.pop %v1548
    %1551 = vrot.lane.b32.xlu0 %v1549, 64
    %v1552 = vpop.permute.xlu0 %1551
    %v1554 = vmul.f32 %v1536, %v1552
    %v1555 = vsel %vm1483, %v1554, %v1365
    %v1556 = vsel %vm1483, %v1548, %v1366
    %v1557 = vsel %vm1483, %v1554, 0.0
    %v1559 = vrot.slane %v1557, 1
    %v1560 = vrot.slane %v1557, 2
    %v1561 = vrot.slane %v1557, 3
    %v1562 = vrot.slane %v1557, 4
    %v1563 = vrot.slane %v1557, 5
    %v1564 = vrot.slane %v1557, 6
    %v1565 = vrot.slane %v1557, 7
    %v1566 = vperm.slane %v1557, 0
    %v1567 = vperm.slane %v1559, 0
    %v1568 = vperm.slane %v1560, 0
    %v1569 = vperm.slane %v1561, 0
    %v1570 = vperm.slane %v1562, 0
    %v1571 = vperm.slane %v1563, 0
    %v1572 = vperm.slane %v1564, 0
    %v1573 = vperm.slane %v1565, 0
    %1574 = vrot.lane.b32.xlu0 %v1566, 32
    %v1575 = vpop.permute.xlu0 %1574
    %1576 = vrot.lane.b32.xlu0 %v1567, 32
    %v1577 = vpop.permute.xlu0 %1576
    %1578 = vrot.lane.b32.xlu0 %v1568, 32
    %v1579 = vpop.permute.xlu0 %1578
    %1580 = vrot.lane.b32.xlu0 %v1569, 32
    %v1581 = vpop.permute.xlu0 %1580
    %1582 = vrot.lane.b32.xlu0 %v1570, 32
    %v1583 = vpop.permute.xlu0 %1582
    %1584 = vrot.lane.b32.xlu0 %v1571, 32
    %v1585 = vpop.permute.xlu0 %1584
    %1586 = vrot.lane.b32.xlu0 %v1572, 32
    %v1587 = vpop.permute.xlu0 %1586
    %1588 = vrot.lane.b32.xlu0 %v1573, 32
    %v1589 = vpop.permute.xlu0 %1588
    %1598 = vst.msk [vmem:[#allocation8 + $0x7] sm:$0x1] %vm268, %v1575
    %1599 = vst.msk [vmem:[#allocation8 + $0xf] sm:$0x1] %vm268, %v1577
    %1600 = vst.msk [vmem:[#allocation8 + $0x17] sm:$0x1] %vm268, %v1579
    %1601 = vst.msk [vmem:[#allocation8 + $0x1f] sm:$0x1] %vm268, %v1581
    %1602 = vst.msk [vmem:[#allocation8 + $0x27] sm:$0x1] %vm268, %v1583
    %1603 = vst.msk [vmem:[#allocation8 + $0x2f] sm:$0x1] %vm268, %v1585
    %1604 = vst.msk [vmem:[#allocation8 + $0x37] sm:$0x1] %vm268, %v1587
    %1605 = vst.msk [vmem:[#allocation8 + $0x3f] sm:$0x1] %vm268, %v1589
    %1606 = vst.msk [vmem:[#allocation9] sm:$0xff] %vm91, %v1488
    %1608 = vrot.lane.b32.xlu0 %v1555, 32
    %v1609 = vpop.permute.xlu0 %1608
    %s1611 = scalar_lea.vmem [#allocation9], 8
    %1612 = vst.msk [vmem:[%s1611] sm:$0xff] %vm91, %v1609
    %1614 = vrot.lane.b32.xlu0 %v1485, 96
    %v1615 = vpop.permute.xlu0 %1614
    %1617 = vst.msk [vmem:[#allocation11] sm:$0xff] %vm91, %v1615
    %1619 = vrot.lane.b32.xlu0 %v1556, 96
    %v1620 = vpop.permute.xlu0 %1619
    %s1622 = scalar_lea.vmem [#allocation11], 8
    %1623 = vst.msk [vmem:[%s1622] sm:$0xff] %vm91, %v1620
    // Predicated region
    $region34: #{tpu_custom_call.1} parent=1 // pred_check
      _
    $region35: #{tpu_custom_call.1} parent=1 // pred_check_branch
      %1625 = sbr.rel (0) target = $region37
    $region36: #{tpu_custom_call.1} parent=1 // pred_region
      %1627 = vsyncadd [#allocation4], 0
      %s1628 = sshll.u32 [#allocation8], 4
      %s1629 = int_to_ptr.vmem [resolvable:$true] %s1628
      %s1630 = sshll.u32 %s5, 4
      %s1631 = int_to_ptr.hbm [resolvable:$true] %s1630
      %1636 = dma.vmem_to_hbm [thread:$0]  %s1629, 1024, %s1631, [#allocation4], 128, 128, 8
    $region37: #{tpu_custom_call.1} parent=1 // pred_fallthru
      _
    // Predicated region
    $region38: #{tpu_custom_call.1} parent=1 // pred_check
      _
    $region39: #{tpu_custom_call.1} parent=1 // pred_check_branch
      %1638 = sbr.rel (0) target = $region41
    $region40: #{tpu_custom_call.1} parent=1 // pred_region
      %1640 = vsyncadd [#allocation10], 0
      %s1641 = sshll.u32 [#allocation9], 4
      %s1642 = int_to_ptr.vmem [resolvable:$true] %s1641
      %s1643 = sshll.u32 %s6, 4
      %s1644 = int_to_ptr.hbm [resolvable:$true] %s1643
      %1649 = dma.vmem_to_hbm [thread:$0]  %s1642, 256, %s1644, [#allocation10], 128, 128, 8
    $region41: #{tpu_custom_call.1} parent=1 // pred_fallthru
      _
    // Predicated region
    $region42: #{tpu_custom_call.1} parent=1 // pred_check
      _
    $region43: #{tpu_custom_call.1} parent=1 // pred_check_branch
      %1651 = sbr.rel (0) target = $region45
    $region44: #{tpu_custom_call.1} parent=1 // pred_region
      %1653 = vsyncadd [#allocation10], 0
      %s1654 = sshll.u32 [#allocation11], 4
      %s1655 = int_to_ptr.vmem [resolvable:$true] %s1654
      %s1656 = sshll.u32 %s7, 4
      %s1657 = int_to_ptr.hbm [resolvable:$true] %s1656
      %1662 = dma.vmem_to_hbm [thread:$0]  %s1655, 256, %s1657, [#allocation10], 128, 128, 8
    $region45: #{tpu_custom_call.1} parent=1 // pred_fallthru
      _
    // Predicated region
    $region46: #{tpu_custom_call.1} parent=1 // pred_check
      _
    $region47: #{tpu_custom_call.1} parent=1 // pred_check_branch
      %1664 = sbr.rel (0) target = $region49
    $region48: #{tpu_custom_call.1} parent=1 // pred_region
      %1666 = dma.done [#allocation4], 1024
    $region49: #{tpu_custom_call.1} parent=1 // pred_fallthru
      _
    // Predicated region
    $region50: #{tpu_custom_call.1} parent=1 // pred_check
      _
    $region51: #{tpu_custom_call.1} parent=1 // pred_check_branch
      %1668 = sbr.rel (0) target = $region53
    $region52: #{tpu_custom_call.1} parent=1 // pred_region
      %1670 = dma.done [#allocation10], 256
    $region53: #{tpu_custom_call.1} parent=1 // pred_fallthru
      _
    // Predicated region
    $region54: #{tpu_custom_call.1} parent=1 // pred_check
      _
    $region55: #{tpu_custom_call.1} parent=1 // pred_check_branch
      %1672 = sbr.rel (0) target = $region57
    $region56: #{tpu_custom_call.1} parent=1 // pred_region
      %1674 = dma.done [#allocation10], 256
    $region57: #{tpu_custom_call.1} parent=1 // pred_fallthru
      _
    %1675 = vsyncpa [#allocation3], 1
    %1676 = vsyncpa [#allocation6], 1
    %1677 = vsyncpa [#allocation4], 1
    %1678 = vsyncpa [#allocation10], 1

</llo_original>
